<compile_context>
chip_gen: v7x
topology: tpu7x:2x2x1
jax: 0.10.0
libtpu: 0.0.40
codegen_flags: <defaults>
</compile_context>

<pallas_src>
import jax
import jax.numpy as jnp
from jax import lax
from jax.experimental import pallas as pl
from jax.experimental.pallas import tpu as pltpu

MXU_DTYPE = jnp.bfloat16       # matmul operand dtype (accumulation is always f32)

# Fixed LeNet geometry (CIFAR 3x32x32 input is required for the 16*5*5 flatten).
IN_H, IN_W, C_IN = 32, 32, 3
KH = KW = 5
C1, C2 = 6, 16
P1 = (IN_H - KH + 1) // 2       # 14 : pooled conv1 spatial size
P2 = (P1 - KH + 1) // 2         # 5  : pooled conv2 spatial size
N1, N2, N3 = 120, 84, 10
LANES_X = IN_W * C_IN           # 96 : one image row, flattened as (w*C_IN + c)


# ----------------------------------------------------------------------------
# The fused kernel (one grid step = TB images through the whole network)
# ----------------------------------------------------------------------------
def _make_kernel(tb):
    m2 = tb * 8                              # rows per (parity / row-group) block

    def kernel(x_ref, wc_ref, wf_ref, b_ref, o_ref, p1_ref):
        # x_ref : (1, 5, tb*32, 128) bf16   LHS slab for conv1 kernel-row di:
        #         row b*32 + r*8 + q  = image row 4q + r + di of local image b
        # wc_ref: (2, 5, 128, 256)    bf16  conv weights, both pool parities along N
        # wf_ref: (8, 128, 128)       bf16  rows 0..4: fc1 per pooled-row, 5: fc2, 6: fc3
        # b_ref : (8, 128)            f32   packed biases
        # o_ref : (tb, 128)           f32   logits (lanes 0..9 valid)
        # p1_ref: (2*tb*8 + 8, 128)   f32   pooled1 scratch
        f32 = jnp.float32
        mx = MXU_DTYPE

        # ---------------- conv1 + ReLU + 2x2 max pool -> 14x14x6 --------------------
        # 5 dots of (tb*32, 128) x (128, 256); both pooling column parities in lanes.
        acc1 = jnp.dot(x_ref[0, 0], wc_ref[0, 0], preferred_element_type=f32)
        for di in range(1, KH):
            acc1 = acc1 + jnp.dot(x_ref[0, di], wc_ref[0, di],
                                  preferred_element_type=f32)
        # acc1 row b*32 + r*8 + q = conv1 output row 4q + r of image b
        # lane  p*128 + pw*6 + f  = conv1 output col 2*pw + p, channel f
        pe_parts, po_parts = [], []
        for b in range(tb):                          # pool over the row pairs
            base = b * 32
            pe_parts.append(jnp.maximum(acc1[base:base + 8], acc1[base + 8:base + 16]))
            po_parts.append(jnp.maximum(acc1[base + 16:base + 24],
                                        acc1[base + 24:base + 32]))
        pe = jnp.concatenate(pe_parts, axis=0)       # (tb*8, 256) pooled rows 0,2,..,12
        po = jnp.concatenate(po_parts, axis=0)       # (tb*8, 256) pooled rows 1,3,..,13
        b1 = b_ref[0:1, :]
        pe = jnp.maximum(jnp.maximum(pe[:, 0:128], pe[:, 128:256]) + b1, 0.0)
        po = jnp.maximum(jnp.maximum(po[:, 0:128], po[:, 128:256]) + b1, 0.0)
        # pooled1 scratch layout: row s*tb*8 + b*8 + m = pooled1 row 2m+s of image b.
        p1_ref[0:m2, :] = pe
        p1_ref[m2:2 * m2, :] = po
        p1_ref[2 * m2:2 * m2 + 8, :] = jnp.zeros((8, 128), f32)   # pad rows (read-safe)

        # ---------------- conv2 + ReLU + 2x2 max pool -> 5x5x16 ---------------------
        # For kernel-row di and conv2 output-row parity u, the LHS rows needed for
        # result row (b, p) are pooled1 row 2p + u + di, i.e. a contiguous tb*8-row
        # slice of the scratch starting at ((u+di)%2)*tb*8 + (u+di)//2.  Stacking the
        # two parities along M gives 5 dots of (2*tb*8, 128) x (128, 256).
        def slab(u, di):
            t = u + di
            start = (t % 2) * m2 + t // 2
            return p1_ref[start:start + m2, :]

        def lhs2(di):
            return jnp.concatenate([slab(0, di), slab(1, di)], axis=0).astype(mx)

        acc2 = jnp.dot(lhs2(0), wc_ref[1, 0], preferred_element_type=f32)
        for di in range(1, KH):
            acc2 = acc2 + jnp.dot(lhs2(di), wc_ref[1, di], preferred_element_type=f32)
        # acc2 row u*tb*8 + b*8 + p = conv2 output row 2p+u of image b
        mu = jnp.maximum(acc2[0:m2, :], acc2[m2:2 * m2, :])
        p2 = jnp.maximum(jnp.maximum(mu[:, 0:128], mu[:, 128:256]) + b_ref[1:2, :], 0.0)
        # p2 row b*8 + h = pooled2 row h of image b (lanes w*16+f, 80 valid, rest 0)

        # ---------------------- fc1 -> ReLU -> fc2 -> ReLU -> fc3 -------------------
        # fc1 = contraction over (pooled2 row h, lanes): 5 dots with M = tb (batch
        # folded into M per review), accumulated in f32.
        def fc1_lhs(h):
            rows = [p2[b * 8 + h:b * 8 + h + 1, :] for b in range(tb)]
            return jnp.concatenate(rows, axis=0).astype(mx)

        h1 = jnp.dot(fc1_lhs(0), wf_ref[0], preferred_element_type=f32)
        for h in range(1, P2):
            h1 = h1 + jnp.dot(fc1_lhs(h), wf_ref[h], preferred_element_type=f32)
        h1 = jnp.maximum(h1 + b_ref[2:3, :], 0.0)                 # lanes >=120 stay 0
        h2 = jnp.dot(h1.astype(mx), wf_ref[5], preferred_element_type=f32)
        h2 = jnp.maximum(h2 + b_ref[3:4, :], 0.0)                 # lanes >=84 stay 0
        o_ref[...] = jnp.dot(h2.astype(mx), wf_ref[6],
                             preferred_element_type=f32) + b_ref[4:5, :]

    return kernel


# ----------------------------------------------------------------------------
# Forward pass wrapper (one pallas_call for the whole network)
# ----------------------------------------------------------------------------
@jax.jit
def custom_connet_forward(x_nchw, prep):
    """x_nchw: (B, 3, 32, 32) f32.  `prep` is the output of prepare_params()."""
    B = x_nchw.shape[0]
    # Batch tiling: one grid step for small batches; 8 images/step otherwise (the
    # output block's sublane dim must be a multiple of 8 or the full batch).
    if B <= 8:
        tb, bp = B, B
    else:
        tb = 8
        bp = ((B + 7) // 8) * 8
    g = bp // tb
    if bp != B:
        x_nchw = jnp.pad(x_nchw, ((0, bp - B), (0, 0), (0, 0), (0, 0)))

    # NCHW -> (B, 32 rows, 96 lanes = w*3+c); pad to 36 rows / 128 lanes; expand into
    # the 5 kernel-row LHS slabs the kernel consumes directly:
    #   xsr[gi, di, b*32 + r*8 + q, :] = image row 4q + r + di of image gi*tb + b.
    x = jnp.transpose(x_nchw, (0, 2, 3, 1)).reshape(bp, IN_H, LANES_X)
    xp = jnp.pad(x, ((0, 0), (0, 4), (0, 128 - LANES_X)))
    slabs = []
    for di in range(KH):
        rs = [lax.slice_in_dim(xp, r + di, r + di + 29, stride=4, axis=1)
              for r in range(4)]                              # each (bp, 8, 128)
        slabs.append(jnp.concatenate(rs, axis=1))             # (bp, 32, 128)
    xsr = jnp.stack(slabs, axis=1).astype(MXU_DTYPE)          # (bp, 5, 32, 128)
    xsr = (xsr.reshape(g, tb, KH, 32, 128).transpose(0, 2, 1, 3, 4)
              .reshape(g, KH, tb * 32, 128))

    out = pl.pallas_call(
        _make_kernel(tb),
        out_shape=jax.ShapeDtypeStruct((bp, 128), jnp.float32),
        grid=(g,),
        in_specs=[pl.BlockSpec((1, KH, tb * 32, 128), lambda i: (i, 0, 0, 0)),
                  pl.BlockSpec((2, KH, 128, 256), lambda i: (0, 0, 0, 0)),
                  pl.BlockSpec((8, 128, 128), lambda i: (0, 0, 0)),
                  pl.BlockSpec((8, 128), lambda i: (0, 0))],
        out_specs=pl.BlockSpec((tb, 128), lambda i: (i, 0)),
        scratch_shapes=[pltpu.VMEM((2 * tb * 8 + 8, 128), jnp.float32)],  # pooled1
        compiler_params=pltpu.CompilerParams(
            dimension_semantics=("parallel",),
            # Let XLA fuse the input relayout into the pallas_call operand read.
            allow_input_fusion=[True, False, False, False]),
    )(xsr, prep["wc"], prep["wf"], prep["bias"])
    return out[:B, :N3]


# ----------------------------------------------------------------------------
# One-time parameter repacking (host/XLA glue, run once at init)
# ----------------------------------------------------------------------------
def _conv_weight_parity_cat(w_oihw, pw_out):
    """(KH, 128, 256) block matrix mapping one flattened input row (lane = w*C_in+c,
    K padded to 128) to BOTH pooling column parities of one conv output row:
        out[di, (2*pw + p + dj)*C_in + c, p*128 + pw*C_out + f] = w[f, c, di, dj]."""
    c_out, c_in, kh, kw = w_oihw.shape
    out = jnp.zeros((kh, 128, 256), jnp.float32)
    pw, dj, c, f = jnp.meshgrid(jnp.arange(pw_out), jnp.arange(kw),
                                jnp.arange(c_in), jnp.arange(c_out), indexing="ij")
    for parity in (0, 1):
        rows = (2 * pw + parity + dj) * c_in + c
        cols = parity * 128 + pw * c_out + f
        for di in range(kh):
            out = out.at[di, rows, cols].set(w_oihw[f, c, di, dj])
    return out


def prepare_params(params):
    """Repack PyTorch-layout parameters into the kernel layout (done once)."""
    mx = MXU_DTYPE
    # Conv weights: both convs stacked into one resident operand.
    wc = jnp.stack([_conv_weight_parity_cat(params["conv1_w"], P1),
                    _conv_weight_parity_cat(params["conv2_w"], P2)]).astype(mx)
    # fc weights: rows 0..4 = fc1 per pooled2-row h (lane = w*16+f, PyTorch flatten
    # order is f*25 + h*5 + w), row 5 = fc2^T, row 6 = fc3^T, row 7 unused.
    wf = jnp.zeros((8, 128, 128), jnp.float32)
    wf1 = (params["fc1_w"].reshape(N1, C2, P2, P2)       # [n, f, h, w]
           .transpose(2, 3, 1, 0)                        # [h, w, f, n]
           .reshape(P2, P2 * C2, N1))
    wf = wf.at[0:P2, 0:P2 * C2, 0:N1].set(wf1)
    wf = wf.at[5, 0:N1, 0:N2].set(params["fc2_w"].T)
    wf = wf.at[6, 0:N2, 0:N3].set(params["fc3_w"].T)
    wf = wf.astype(mx)
    # Biases: one resident (8, 128) f32 operand (zero-padded lanes stay exactly 0
    # through the padded matmul columns, which the kernel relies on).
    bias = jnp.zeros((8, 128), jnp.float32)
    bias = bias.at[0, 0:P1 * C1].set(jnp.tile(params["conv1_b"], P1))
    bias = bias.at[1, 0:P2 * C2].set(jnp.tile(params["conv2_b"], P2))
    bias = bias.at[2, 0:N1].set(params["fc1_b"])
    bias = bias.at[3, 0:N2].set(params["fc2_b"])
    bias = bias.at[4, 0:N3].set(params["fc3_b"])
    return {"wc": wc, "wf": wf, "bias": bias}


# ----------------------------------------------------------------------------
# Deterministic parameter init (PyTorch default U(-1/sqrt(fan_in), +1/sqrt(fan_in)))
# ----------------------------------------------------------------------------
def init_params(key):
    ks = jax.random.split(key, 10)

    def u(k, shape, fan_in):
        bound = 1.0 / jnp.sqrt(jnp.float32(fan_in))
        return jax.random.uniform(k, shape, jnp.float32, -bound, bound)

    return {
        "conv1_w": u(ks[0], (6, 3, 5, 5), 3 * 5 * 5),
        "conv1_b": u(ks[1], (6,), 3 * 5 * 5),
        "conv2_w": u(ks[2], (16, 6, 5, 5), 6 * 5 * 5),
        "conv2_b": u(ks[3], (16,), 6 * 5 * 5),
        "fc1_w":   u(ks[4], (120, 400), 400),
        "fc1_b":   u(ks[5], (120,), 400),
        "fc2_w":   u(ks[6], (84, 120), 120),
        "fc2_b":   u(ks[7], (84,), 120),
        "fc3_w":   u(ks[8], (10, 84), 84),
        "fc3_b":   u(ks[9], (10,), 84),
    }


# ----------------------------------------------------------------------------
# Pure-JAX f32 reference (for a loose numerical self-check)
# ----------------------------------------------------------------------------
@jax.jit
def reference_forward(x_nchw, params):
    dn = ("NCHW", "OIHW", "NCHW")
    b = x_nchw.shape[0]
    y = lax.conv_general_dilated(x_nchw, params["conv1_w"], (1, 1), "VALID",
                                 dimension_numbers=dn)
    y = jnp.maximum(y + params["conv1_b"][None, :, None, None], 0.0)
    y = y.reshape(b, C1, P1, 2, P1, 2).max(axis=(3, 5))
    y = lax.conv_general_dilated(y, params["conv2_w"], (1, 1), "VALID",
                                 dimension_numbers=dn)
    y = jnp.maximum(y + params["conv2_b"][None, :, None, None], 0.0)
    y = y.reshape(b, C2, P2, 2, P2, 2).max(axis=(3, 5))
    y = y.reshape(b, C2 * P2 * P2)
    y = jnp.maximum(y @ params["fc1_w"].T + params["fc1_b"], 0.0)
    y = jnp.maximum(y @ params["fc2_w"].T + params["fc2_b"], 0.0)
    return y @ params["fc3_w"].T + params["fc3_b"]


if __name__ == "__main__":
    key = jax.random.PRNGKey(0)
    pkey, xkey = jax.random.split(key)
    params = init_params(pkey)
    prep = prepare_params(params)            # one-time weight repack
    x = jax.random.normal(xkey, (2, 3, 32, 32), jnp.float32)

    out = jax.block_until_ready(custom_connet_forward(x, prep))
    assert out.shape == (2, 10), out.shape
    assert bool(jnp.all(jnp.isfinite(out)))

    # Loose tolerance: the kernel feeds the MXU bf16 operands (f32 accumulation).
    ref = reference_forward(x, params)
    err = float(jnp.max(jnp.abs(out - ref)))
    assert err < 5e-2, f"max abs error vs reference: {err}"
    print("KERNEL_OK")
</pallas_src>

<mosaic_0001>
module attributes {stable_mosaic.version = 11 : i64} {
  func.func @kernel(%arg0: i32, %arg1: memref<1x5x64x128xbf16, #tpu.memory_space<vmem>>, %arg2: memref<2x5x128x256xbf16, #tpu.memory_space<vmem>>, %arg3: memref<8x128x128xbf16, #tpu.memory_space<vmem>>, %arg4: memref<8x128xf32, #tpu.memory_space<vmem>>, %arg5: memref<2x128xf32, #tpu.memory_space<vmem>>, %arg6: memref<40x128xf32, #tpu.memory_space<vmem>>) attributes {dimension_semantics = [#tpu.dimension_semantics<parallel>], iteration_bounds = array<i64: 1>, scalar_prefetch = 0 : i64, scratch_operands = 1 : i64, tpu.core_type = #tpu.core_type<tc>, window_params = [{transform_indices = @transform_0, window_bounds = array<i64: 1, 5, 64, 128>}, {pipeline_mode = #tpu.pipeline_mode<synchronous>, transform_indices = @transform_1, window_bounds = array<i64: 2, 5, 128, 256>}, {pipeline_mode = #tpu.pipeline_mode<synchronous>, transform_indices = @transform_2, window_bounds = array<i64: 8, 128, 128>}, {pipeline_mode = #tpu.pipeline_mode<synchronous>, transform_indices = @transform_3, window_bounds = array<i64: 8, 128>}, {transform_indices = @transform_4, window_bounds = array<i64: 2, 128>}]} {
    %c0 = arith.constant 0 : index
    %c0_0 = arith.constant 0 : index
    %c0_1 = arith.constant 0 : index
    %c0_2 = arith.constant 0 : index
    %0 = vector.load %arg1[%c0, %c0_0, %c0_1, %c0_2] : memref<1x5x64x128xbf16, #tpu.memory_space<vmem>>, vector<1x1x64x128xbf16>
    %1 = vector.shape_cast %0 : vector<1x1x64x128xbf16> to vector<64x128xbf16>
    %c0_3 = arith.constant 0 : index
    %c0_4 = arith.constant 0 : index
    %c0_5 = arith.constant 0 : index
    %c0_6 = arith.constant 0 : index
    %2 = vector.load %arg2[%c0_3, %c0_4, %c0_5, %c0_6] : memref<2x5x128x256xbf16, #tpu.memory_space<vmem>>, vector<1x1x128x256xbf16>
    %3 = vector.shape_cast %2 : vector<1x1x128x256xbf16> to vector<128x256xbf16>
    %cst = arith.constant dense<0.000000e+00> : vector<64x256xf32>
    %4 = tpu.matmul %1, %3, %cst {dimension_numbers = #tpu.dot_dimension_numbers<[1], [0], [0], [1], [0, 0, 1, 1], [], []>} : vector<64x128xbf16>, vector<128x256xbf16>, vector<64x256xf32> -> vector<64x256xf32>
    %c0_7 = arith.constant 0 : index
    %c1 = arith.constant 1 : index
    %c0_8 = arith.constant 0 : index
    %c0_9 = arith.constant 0 : index
    %5 = vector.load %arg1[%c0_7, %c1, %c0_8, %c0_9] : memref<1x5x64x128xbf16, #tpu.memory_space<vmem>>, vector<1x1x64x128xbf16>
    %6 = vector.shape_cast %5 : vector<1x1x64x128xbf16> to vector<64x128xbf16>
    %c0_10 = arith.constant 0 : index
    %c1_11 = arith.constant 1 : index
    %c0_12 = arith.constant 0 : index
    %c0_13 = arith.constant 0 : index
    %7 = vector.load %arg2[%c0_10, %c1_11, %c0_12, %c0_13] : memref<2x5x128x256xbf16, #tpu.memory_space<vmem>>, vector<1x1x128x256xbf16>
    %8 = vector.shape_cast %7 : vector<1x1x128x256xbf16> to vector<128x256xbf16>
    %cst_14 = arith.constant dense<0.000000e+00> : vector<64x256xf32>
    %9 = tpu.matmul %6, %8, %cst_14 {dimension_numbers = #tpu.dot_dimension_numbers<[1], [0], [0], [1], [0, 0, 1, 1], [], []>} : vector<64x128xbf16>, vector<128x256xbf16>, vector<64x256xf32> -> vector<64x256xf32>
    %10 = arith.addf %4, %9 : vector<64x256xf32>
    %c0_15 = arith.constant 0 : index
    %c2 = arith.constant 2 : index
    %c0_16 = arith.constant 0 : index
    %c0_17 = arith.constant 0 : index
    %11 = vector.load %arg1[%c0_15, %c2, %c0_16, %c0_17] : memref<1x5x64x128xbf16, #tpu.memory_space<vmem>>, vector<1x1x64x128xbf16>
    %12 = vector.shape_cast %11 : vector<1x1x64x128xbf16> to vector<64x128xbf16>
    %c0_18 = arith.constant 0 : index
    %c2_19 = arith.constant 2 : index
    %c0_20 = arith.constant 0 : index
    %c0_21 = arith.constant 0 : index
    %13 = vector.load %arg2[%c0_18, %c2_19, %c0_20, %c0_21] : memref<2x5x128x256xbf16, #tpu.memory_space<vmem>>, vector<1x1x128x256xbf16>
    %14 = vector.shape_cast %13 : vector<1x1x128x256xbf16> to vector<128x256xbf16>
    %cst_22 = arith.constant dense<0.000000e+00> : vector<64x256xf32>
    %15 = tpu.matmul %12, %14, %cst_22 {dimension_numbers = #tpu.dot_dimension_numbers<[1], [0], [0], [1], [0, 0, 1, 1], [], []>} : vector<64x128xbf16>, vector<128x256xbf16>, vector<64x256xf32> -> vector<64x256xf32>
    %16 = arith.addf %10, %15 : vector<64x256xf32>
    %c0_23 = arith.constant 0 : index
    %c3 = arith.constant 3 : index
    %c0_24 = arith.constant 0 : index
    %c0_25 = arith.constant 0 : index
    %17 = vector.load %arg1[%c0_23, %c3, %c0_24, %c0_25] : memref<1x5x64x128xbf16, #tpu.memory_space<vmem>>, vector<1x1x64x128xbf16>
    %18 = vector.shape_cast %17 : vector<1x1x64x128xbf16> to vector<64x128xbf16>
    %c0_26 = arith.constant 0 : index
    %c3_27 = arith.constant 3 : index
    %c0_28 = arith.constant 0 : index
    %c0_29 = arith.constant 0 : index
    %19 = vector.load %arg2[%c0_26, %c3_27, %c0_28, %c0_29] : memref<2x5x128x256xbf16, #tpu.memory_space<vmem>>, vector<1x1x128x256xbf16>
    %20 = vector.shape_cast %19 : vector<1x1x128x256xbf16> to vector<128x256xbf16>
    %cst_30 = arith.constant dense<0.000000e+00> : vector<64x256xf32>
    %21 = tpu.matmul %18, %20, %cst_30 {dimension_numbers = #tpu.dot_dimension_numbers<[1], [0], [0], [1], [0, 0, 1, 1], [], []>} : vector<64x128xbf16>, vector<128x256xbf16>, vector<64x256xf32> -> vector<64x256xf32>
    %22 = arith.addf %16, %21 : vector<64x256xf32>
    %c0_31 = arith.constant 0 : index
    %c4 = arith.constant 4 : index
    %c0_32 = arith.constant 0 : index
    %c0_33 = arith.constant 0 : index
    %23 = vector.load %arg1[%c0_31, %c4, %c0_32, %c0_33] : memref<1x5x64x128xbf16, #tpu.memory_space<vmem>>, vector<1x1x64x128xbf16>
    %24 = vector.shape_cast %23 : vector<1x1x64x128xbf16> to vector<64x128xbf16>
    %c0_34 = arith.constant 0 : index
    %c4_35 = arith.constant 4 : index
    %c0_36 = arith.constant 0 : index
    %c0_37 = arith.constant 0 : index
    %25 = vector.load %arg2[%c0_34, %c4_35, %c0_36, %c0_37] : memref<2x5x128x256xbf16, #tpu.memory_space<vmem>>, vector<1x1x128x256xbf16>
    %26 = vector.shape_cast %25 : vector<1x1x128x256xbf16> to vector<128x256xbf16>
    %cst_38 = arith.constant dense<0.000000e+00> : vector<64x256xf32>
    %27 = tpu.matmul %24, %26, %cst_38 {dimension_numbers = #tpu.dot_dimension_numbers<[1], [0], [0], [1], [0, 0, 1, 1], [], []>} : vector<64x128xbf16>, vector<128x256xbf16>, vector<64x256xf32> -> vector<64x256xf32>
    %28 = arith.addf %22, %27 : vector<64x256xf32>
    %29 = vector.extract_strided_slice %28 {offsets = [0, 0], sizes = [8, 256], strides = [1, 1]} : vector<64x256xf32> to vector<8x256xf32>
    %30 = vector.extract_strided_slice %28 {offsets = [8, 0], sizes = [8, 256], strides = [1, 1]} : vector<64x256xf32> to vector<8x256xf32>
    %31 = arith.maximumf %29, %30 : vector<8x256xf32>
    %32 = vector.extract_strided_slice %28 {offsets = [16, 0], sizes = [8, 256], strides = [1, 1]} : vector<64x256xf32> to vector<8x256xf32>
    %33 = vector.extract_strided_slice %28 {offsets = [24, 0], sizes = [8, 256], strides = [1, 1]} : vector<64x256xf32> to vector<8x256xf32>
    %34 = arith.maximumf %32, %33 : vector<8x256xf32>
    %35 = vector.extract_strided_slice %28 {offsets = [32, 0], sizes = [8, 256], strides = [1, 1]} : vector<64x256xf32> to vector<8x256xf32>
    %36 = vector.extract_strided_slice %28 {offsets = [40, 0], sizes = [8, 256], strides = [1, 1]} : vector<64x256xf32> to vector<8x256xf32>
    %37 = arith.maximumf %35, %36 : vector<8x256xf32>
    %38 = vector.extract_strided_slice %28 {offsets = [48, 0], sizes = [8, 256], strides = [1, 1]} : vector<64x256xf32> to vector<8x256xf32>
    %39 = vector.extract_strided_slice %28 {offsets = [56, 0], sizes = [8, 256], strides = [1, 1]} : vector<64x256xf32> to vector<8x256xf32>
    %40 = arith.maximumf %38, %39 : vector<8x256xf32>
    %41 = tpu.concatenate %31, %37 in 0 : vector<8x256xf32>, vector<8x256xf32> -> vector<16x256xf32>
    %42 = tpu.concatenate %34, %40 in 0 : vector<8x256xf32>, vector<8x256xf32> -> vector<16x256xf32>
    %c0_39 = arith.constant 0 : index
    %c0_40 = arith.constant 0 : index
    %43 = vector.load %arg4[%c0_39, %c0_40] : memref<8x128xf32, #tpu.memory_space<vmem>>, vector<1x128xf32>
    %44 = vector.extract_strided_slice %41 {offsets = [0, 0], sizes = [16, 128], strides = [1, 1]} : vector<16x256xf32> to vector<16x128xf32>
    %45 = vector.extract_strided_slice %41 {offsets = [0, 128], sizes = [16, 128], strides = [1, 1]} : vector<16x256xf32> to vector<16x128xf32>
    %46 = arith.maximumf %44, %45 : vector<16x128xf32>
    %47 = vector.broadcast %43 : vector<1x128xf32> to vector<16x128xf32>
    %48 = arith.addf %46, %47 : vector<16x128xf32>
    %cst_41 = arith.constant 0.000000e+00 : f32
    %49 = vector.broadcast %cst_41 : f32 to vector<16x128xf32>
    %50 = arith.maximumf %48, %49 : vector<16x128xf32>
    %51 = vector.extract_strided_slice %42 {offsets = [0, 0], sizes = [16, 128], strides = [1, 1]} : vector<16x256xf32> to vector<16x128xf32>
    %52 = vector.extract_strided_slice %42 {offsets = [0, 128], sizes = [16, 128], strides = [1, 1]} : vector<16x256xf32> to vector<16x128xf32>
    %53 = arith.maximumf %51, %52 : vector<16x128xf32>
    %54 = vector.broadcast %43 : vector<1x128xf32> to vector<16x128xf32>
    %55 = arith.addf %53, %54 : vector<16x128xf32>
    %cst_42 = arith.constant 0.000000e+00 : f32
    %56 = vector.broadcast %cst_42 : f32 to vector<16x128xf32>
    %57 = arith.maximumf %55, %56 : vector<16x128xf32>
    %c0_43 = arith.constant 0 : index
    %c0_44 = arith.constant 0 : index
    %58 = vector.load %arg6[%c0_43, %c0_44] : memref<40x128xf32, #tpu.memory_space<vmem>>, vector<16x128xf32>
    tpu.vector_store %arg6[%c0_43, %c0_44], %50 {strides = array<i32>} : memref<40x128xf32, #tpu.memory_space<vmem>>, vector<16x128xf32>,
    %c16 = arith.constant 16 : index
    %c0_45 = arith.constant 0 : index
    %59 = vector.load %arg6[%c16, %c0_45] : memref<40x128xf32, #tpu.memory_space<vmem>>, vector<16x128xf32>
    tpu.vector_store %arg6[%c16, %c0_45], %57 {strides = array<i32>} : memref<40x128xf32, #tpu.memory_space<vmem>>, vector<16x128xf32>,
    %cst_46 = arith.constant 0.000000e+00 : f32
    %60 = vector.broadcast %cst_46 : f32 to vector<8x128xf32>
    %c32 = arith.constant 32 : index
    %c0_47 = arith.constant 0 : index
    %61 = vector.load %arg6[%c32, %c0_47] : memref<40x128xf32, #tpu.memory_space<vmem>>, vector<8x128xf32>
    tpu.vector_store %arg6[%c32, %c0_47], %60 {strides = array<i32>} : memref<40x128xf32, #tpu.memory_space<vmem>>, vector<8x128xf32>,
    %c0_48 = arith.constant 0 : index
    %c0_49 = arith.constant 0 : index
    %62 = vector.load %arg6[%c0_48, %c0_49] : memref<40x128xf32, #tpu.memory_space<vmem>>, vector<16x128xf32>
    %c16_50 = arith.constant 16 : index
    %c0_51 = arith.constant 0 : index
    %63 = vector.load %arg6[%c16_50, %c0_51] : memref<40x128xf32, #tpu.memory_space<vmem>>, vector<16x128xf32>
    %64 = tpu.concatenate %62, %63 in 0 : vector<16x128xf32>, vector<16x128xf32> -> vector<32x128xf32>
    %65 = arith.truncf %64 : vector<32x128xf32> to vector<32x128xbf16>
    %c1_52 = arith.constant 1 : index
    %c0_53 = arith.constant 0 : index
    %c0_54 = arith.constant 0 : index
    %c0_55 = arith.constant 0 : index
    %66 = vector.load %arg2[%c1_52, %c0_53, %c0_54, %c0_55] : memref<2x5x128x256xbf16, #tpu.memory_space<vmem>>, vector<1x1x128x256xbf16>
    %67 = vector.shape_cast %66 : vector<1x1x128x256xbf16> to vector<128x256xbf16>
    %cst_56 = arith.constant dense<0.000000e+00> : vector<32x256xf32>
    %68 = tpu.matmul %65, %67, %cst_56 {dimension_numbers = #tpu.dot_dimension_numbers<[1], [0], [0], [1], [0, 0, 1, 1], [], []>} : vector<32x128xbf16>, vector<128x256xbf16>, vector<32x256xf32> -> vector<32x256xf32>
    %c16_57 = arith.constant 16 : index
    %c0_58 = arith.constant 0 : index
    %69 = vector.load %arg6[%c16_57, %c0_58] : memref<40x128xf32, #tpu.memory_space<vmem>>, vector<16x128xf32>
    %c1_59 = arith.constant 1 : index
    %c0_60 = arith.constant 0 : index
    %70 = vector.load %arg6[%c1_59, %c0_60] : memref<40x128xf32, #tpu.memory_space<vmem>>, vector<16x128xf32>
    %71 = tpu.concatenate %69, %70 in 0 : vector<16x128xf32>, vector<16x128xf32> -> vector<32x128xf32>
    %72 = arith.truncf %71 : vector<32x128xf32> to vector<32x128xbf16>
    %c1_61 = arith.constant 1 : index
    %c1_62 = arith.constant 1 : index
    %c0_63 = arith.constant 0 : index
    %c0_64 = arith.constant 0 : index
    %73 = vector.load %arg2[%c1_61, %c1_62, %c0_63, %c0_64] : memref<2x5x128x256xbf16, #tpu.memory_space<vmem>>, vector<1x1x128x256xbf16>
    %74 = vector.shape_cast %73 : vector<1x1x128x256xbf16> to vector<128x256xbf16>
    %cst_65 = arith.constant dense<0.000000e+00> : vector<32x256xf32>
    %75 = tpu.matmul %72, %74, %cst_65 {dimension_numbers = #tpu.dot_dimension_numbers<[1], [0], [0], [1], [0, 0, 1, 1], [], []>} : vector<32x128xbf16>, vector<128x256xbf16>, vector<32x256xf32> -> vector<32x256xf32>
    %76 = arith.addf %68, %75 : vector<32x256xf32>
    %c1_66 = arith.constant 1 : index
    %c0_67 = arith.constant 0 : index
    %77 = vector.load %arg6[%c1_66, %c0_67] : memref<40x128xf32, #tpu.memory_space<vmem>>, vector<16x128xf32>
    %c17 = arith.constant 17 : index
    %c0_68 = arith.constant 0 : index
    %78 = vector.load %arg6[%c17, %c0_68] : memref<40x128xf32, #tpu.memory_space<vmem>>, vector<16x128xf32>
    %79 = tpu.concatenate %77, %78 in 0 : vector<16x128xf32>, vector<16x128xf32> -> vector<32x128xf32>
    %80 = arith.truncf %79 : vector<32x128xf32> to vector<32x128xbf16>
    %c1_69 = arith.constant 1 : index
    %c2_70 = arith.constant 2 : index
    %c0_71 = arith.constant 0 : index
    %c0_72 = arith.constant 0 : index
    %81 = vector.load %arg2[%c1_69, %c2_70, %c0_71, %c0_72] : memref<2x5x128x256xbf16, #tpu.memory_space<vmem>>, vector<1x1x128x256xbf16>
    %82 = vector.shape_cast %81 : vector<1x1x128x256xbf16> to vector<128x256xbf16>
    %cst_73 = arith.constant dense<0.000000e+00> : vector<32x256xf32>
    %83 = tpu.matmul %80, %82, %cst_73 {dimension_numbers = #tpu.dot_dimension_numbers<[1], [0], [0], [1], [0, 0, 1, 1], [], []>} : vector<32x128xbf16>, vector<128x256xbf16>, vector<32x256xf32> -> vector<32x256xf32>
    %84 = arith.addf %76, %83 : vector<32x256xf32>
    %c17_74 = arith.constant 17 : index
    %c0_75 = arith.constant 0 : index
    %85 = vector.load %arg6[%c17_74, %c0_75] : memref<40x128xf32, #tpu.memory_space<vmem>>, vector<16x128xf32>
    %c2_76 = arith.constant 2 : index
    %c0_77 = arith.constant 0 : index
    %86 = vector.load %arg6[%c2_76, %c0_77] : memref<40x128xf32, #tpu.memory_space<vmem>>, vector<16x128xf32>
    %87 = tpu.concatenate %85, %86 in 0 : vector<16x128xf32>, vector<16x128xf32> -> vector<32x128xf32>
    %88 = arith.truncf %87 : vector<32x128xf32> to vector<32x128xbf16>
    %c1_78 = arith.constant 1 : index
    %c3_79 = arith.constant 3 : index
    %c0_80 = arith.constant 0 : index
    %c0_81 = arith.constant 0 : index
    %89 = vector.load %arg2[%c1_78, %c3_79, %c0_80, %c0_81] : memref<2x5x128x256xbf16, #tpu.memory_space<vmem>>, vector<1x1x128x256xbf16>
    %90 = vector.shape_cast %89 : vector<1x1x128x256xbf16> to vector<128x256xbf16>
    %cst_82 = arith.constant dense<0.000000e+00> : vector<32x256xf32>
    %91 = tpu.matmul %88, %90, %cst_82 {dimension_numbers = #tpu.dot_dimension_numbers<[1], [0], [0], [1], [0, 0, 1, 1], [], []>} : vector<32x128xbf16>, vector<128x256xbf16>, vector<32x256xf32> -> vector<32x256xf32>
    %92 = arith.addf %84, %91 : vector<32x256xf32>
    %c2_83 = arith.constant 2 : index
    %c0_84 = arith.constant 0 : index
    %93 = vector.load %arg6[%c2_83, %c0_84] : memref<40x128xf32, #tpu.memory_space<vmem>>, vector<16x128xf32>
    %c18 = arith.constant 18 : index
    %c0_85 = arith.constant 0 : index
    %94 = vector.load %arg6[%c18, %c0_85] : memref<40x128xf32, #tpu.memory_space<vmem>>, vector<16x128xf32>
    %95 = tpu.concatenate %93, %94 in 0 : vector<16x128xf32>, vector<16x128xf32> -> vector<32x128xf32>
    %96 = arith.truncf %95 : vector<32x128xf32> to vector<32x128xbf16>
    %c1_86 = arith.constant 1 : index
    %c4_87 = arith.constant 4 : index
    %c0_88 = arith.constant 0 : index
    %c0_89 = arith.constant 0 : index
    %97 = vector.load %arg2[%c1_86, %c4_87, %c0_88, %c0_89] : memref<2x5x128x256xbf16, #tpu.memory_space<vmem>>, vector<1x1x128x256xbf16>
    %98 = vector.shape_cast %97 : vector<1x1x128x256xbf16> to vector<128x256xbf16>
    %cst_90 = arith.constant dense<0.000000e+00> : vector<32x256xf32>
    %99 = tpu.matmul %96, %98, %cst_90 {dimension_numbers = #tpu.dot_dimension_numbers<[1], [0], [0], [1], [0, 0, 1, 1], [], []>} : vector<32x128xbf16>, vector<128x256xbf16>, vector<32x256xf32> -> vector<32x256xf32>
    %100 = arith.addf %92, %99 : vector<32x256xf32>
    %101 = vector.extract_strided_slice %100 {offsets = [0, 0], sizes = [16, 256], strides = [1, 1]} : vector<32x256xf32> to vector<16x256xf32>
    %102 = vector.extract_strided_slice %100 {offsets = [16, 0], sizes = [16, 256], strides = [1, 1]} : vector<32x256xf32> to vector<16x256xf32>
    %103 = arith.maximumf %101, %102 : vector<16x256xf32>
    %104 = vector.extract_strided_slice %103 {offsets = [0, 0], sizes = [16, 128], strides = [1, 1]} : vector<16x256xf32> to vector<16x128xf32>
    %105 = vector.extract_strided_slice %103 {offsets = [0, 128], sizes = [16, 128], strides = [1, 1]} : vector<16x256xf32> to vector<16x128xf32>
    %106 = arith.maximumf %104, %105 : vector<16x128xf32>
    %c1_91 = arith.constant 1 : index
    %c0_92 = arith.constant 0 : index
    %107 = vector.load %arg4[%c1_91, %c0_92] : memref<8x128xf32, #tpu.memory_space<vmem>>, vector<1x128xf32>
    %108 = vector.broadcast %107 : vector<1x128xf32> to vector<16x128xf32>
    %109 = arith.addf %106, %108 : vector<16x128xf32>
    %cst_93 = arith.constant 0.000000e+00 : f32
    %110 = vector.broadcast %cst_93 : f32 to vector<16x128xf32>
    %111 = arith.maximumf %109, %110 : vector<16x128xf32>
    %112 = vector.extract_strided_slice %111 {offsets = [0, 0], sizes = [1, 128], strides = [1, 1]} : vector<16x128xf32> to vector<1x128xf32>
    %113 = vector.extract_strided_slice %111 {offsets = [8, 0], sizes = [1, 128], strides = [1, 1]} : vector<16x128xf32> to vector<1x128xf32>
    %114 = tpu.concatenate %112, %113 in 0 : vector<1x128xf32>, vector<1x128xf32> -> vector<2x128xf32>
    %115 = arith.truncf %114 : vector<2x128xf32> to vector<2x128xbf16>
    %c0_94 = arith.constant 0 : index
    %c0_95 = arith.constant 0 : index
    %c0_96 = arith.constant 0 : index
    %116 = vector.load %arg3[%c0_94, %c0_95, %c0_96] : memref<8x128x128xbf16, #tpu.memory_space<vmem>>, vector<1x128x128xbf16>
    %117 = vector.shape_cast %116 : vector<1x128x128xbf16> to vector<128x128xbf16>
    %cst_97 = arith.constant dense<0.000000e+00> : vector<2x128xf32>
    %118 = tpu.matmul %115, %117, %cst_97 {dimension_numbers = #tpu.dot_dimension_numbers<[1], [0], [0], [1], [0, 0, 1, 1], [], []>} : vector<2x128xbf16>, vector<128x128xbf16>, vector<2x128xf32> -> vector<2x128xf32>
    %119 = vector.extract_strided_slice %111 {offsets = [1, 0], sizes = [1, 128], strides = [1, 1]} : vector<16x128xf32> to vector<1x128xf32>
    %120 = vector.extract_strided_slice %111 {offsets = [9, 0], sizes = [1, 128], strides = [1, 1]} : vector<16x128xf32> to vector<1x128xf32>
    %121 = tpu.concatenate %119, %120 in 0 : vector<1x128xf32>, vector<1x128xf32> -> vector<2x128xf32>
    %122 = arith.truncf %121 : vector<2x128xf32> to vector<2x128xbf16>
    %c1_98 = arith.constant 1 : index
    %c0_99 = arith.constant 0 : index
    %c0_100 = arith.constant 0 : index
    %123 = vector.load %arg3[%c1_98, %c0_99, %c0_100] : memref<8x128x128xbf16, #tpu.memory_space<vmem>>, vector<1x128x128xbf16>
    %124 = vector.shape_cast %123 : vector<1x128x128xbf16> to vector<128x128xbf16>
    %cst_101 = arith.constant dense<0.000000e+00> : vector<2x128xf32>
    %125 = tpu.matmul %122, %124, %cst_101 {dimension_numbers = #tpu.dot_dimension_numbers<[1], [0], [0], [1], [0, 0, 1, 1], [], []>} : vector<2x128xbf16>, vector<128x128xbf16>, vector<2x128xf32> -> vector<2x128xf32>
    %126 = arith.addf %118, %125 : vector<2x128xf32>
    %127 = vector.extract_strided_slice %111 {offsets = [2, 0], sizes = [1, 128], strides = [1, 1]} : vector<16x128xf32> to vector<1x128xf32>
    %128 = vector.extract_strided_slice %111 {offsets = [10, 0], sizes = [1, 128], strides = [1, 1]} : vector<16x128xf32> to vector<1x128xf32>
    %129 = tpu.concatenate %127, %128 in 0 : vector<1x128xf32>, vector<1x128xf32> -> vector<2x128xf32>
    %130 = arith.truncf %129 : vector<2x128xf32> to vector<2x128xbf16>
    %c2_102 = arith.constant 2 : index
    %c0_103 = arith.constant 0 : index
    %c0_104 = arith.constant 0 : index
    %131 = vector.load %arg3[%c2_102, %c0_103, %c0_104] : memref<8x128x128xbf16, #tpu.memory_space<vmem>>, vector<1x128x128xbf16>
    %132 = vector.shape_cast %131 : vector<1x128x128xbf16> to vector<128x128xbf16>
    %cst_105 = arith.constant dense<0.000000e+00> : vector<2x128xf32>
    %133 = tpu.matmul %130, %132, %cst_105 {dimension_numbers = #tpu.dot_dimension_numbers<[1], [0], [0], [1], [0, 0, 1, 1], [], []>} : vector<2x128xbf16>, vector<128x128xbf16>, vector<2x128xf32> -> vector<2x128xf32>
    %134 = arith.addf %126, %133 : vector<2x128xf32>
    %135 = vector.extract_strided_slice %111 {offsets = [3, 0], sizes = [1, 128], strides = [1, 1]} : vector<16x128xf32> to vector<1x128xf32>
    %136 = vector.extract_strided_slice %111 {offsets = [11, 0], sizes = [1, 128], strides = [1, 1]} : vector<16x128xf32> to vector<1x128xf32>
    %137 = tpu.concatenate %135, %136 in 0 : vector<1x128xf32>, vector<1x128xf32> -> vector<2x128xf32>
    %138 = arith.truncf %137 : vector<2x128xf32> to vector<2x128xbf16>
    %c3_106 = arith.constant 3 : index
    %c0_107 = arith.constant 0 : index
    %c0_108 = arith.constant 0 : index
    %139 = vector.load %arg3[%c3_106, %c0_107, %c0_108] : memref<8x128x128xbf16, #tpu.memory_space<vmem>>, vector<1x128x128xbf16>
    %140 = vector.shape_cast %139 : vector<1x128x128xbf16> to vector<128x128xbf16>
    %cst_109 = arith.constant dense<0.000000e+00> : vector<2x128xf32>
    %141 = tpu.matmul %138, %140, %cst_109 {dimension_numbers = #tpu.dot_dimension_numbers<[1], [0], [0], [1], [0, 0, 1, 1], [], []>} : vector<2x128xbf16>, vector<128x128xbf16>, vector<2x128xf32> -> vector<2x128xf32>
    %142 = arith.addf %134, %141 : vector<2x128xf32>
    %143 = vector.extract_strided_slice %111 {offsets = [4, 0], sizes = [1, 128], strides = [1, 1]} : vector<16x128xf32> to vector<1x128xf32>
    %144 = vector.extract_strided_slice %111 {offsets = [12, 0], sizes = [1, 128], strides = [1, 1]} : vector<16x128xf32> to vector<1x128xf32>
    %145 = tpu.concatenate %143, %144 in 0 : vector<1x128xf32>, vector<1x128xf32> -> vector<2x128xf32>
    %146 = arith.truncf %145 : vector<2x128xf32> to vector<2x128xbf16>
    %c4_110 = arith.constant 4 : index
    %c0_111 = arith.constant 0 : index
    %c0_112 = arith.constant 0 : index
    %147 = vector.load %arg3[%c4_110, %c0_111, %c0_112] : memref<8x128x128xbf16, #tpu.memory_space<vmem>>, vector<1x128x128xbf16>
    %148 = vector.shape_cast %147 : vector<1x128x128xbf16> to vector<128x128xbf16>
    %cst_113 = arith.constant dense<0.000000e+00> : vector<2x128xf32>
    %149 = tpu.matmul %146, %148, %cst_113 {dimension_numbers = #tpu.dot_dimension_numbers<[1], [0], [0], [1], [0, 0, 1, 1], [], []>} : vector<2x128xbf16>, vector<128x128xbf16>, vector<2x128xf32> -> vector<2x128xf32>
    %150 = arith.addf %142, %149 : vector<2x128xf32>
    %c2_114 = arith.constant 2 : index
    %c0_115 = arith.constant 0 : index
    %151 = vector.load %arg4[%c2_114, %c0_115] : memref<8x128xf32, #tpu.memory_space<vmem>>, vector<1x128xf32>
    %152 = vector.broadcast %151 : vector<1x128xf32> to vector<2x128xf32>
    %153 = arith.addf %150, %152 : vector<2x128xf32>
    %cst_116 = arith.constant 0.000000e+00 : f32
    %154 = vector.broadcast %cst_116 : f32 to vector<2x128xf32>
    %155 = arith.maximumf %153, %154 : vector<2x128xf32>
    %156 = arith.truncf %155 : vector<2x128xf32> to vector<2x128xbf16>
    %c5 = arith.constant 5 : index
    %c0_117 = arith.constant 0 : index
    %c0_118 = arith.constant 0 : index
    %157 = vector.load %arg3[%c5, %c0_117, %c0_118] : memref<8x128x128xbf16, #tpu.memory_space<vmem>>, vector<1x128x128xbf16>
    %158 = vector.shape_cast %157 : vector<1x128x128xbf16> to vector<128x128xbf16>
    %cst_119 = arith.constant dense<0.000000e+00> : vector<2x128xf32>
    %159 = tpu.matmul %156, %158, %cst_119 {dimension_numbers = #tpu.dot_dimension_numbers<[1], [0], [0], [1], [0, 0, 1, 1], [], []>} : vector<2x128xbf16>, vector<128x128xbf16>, vector<2x128xf32> -> vector<2x128xf32>
    %c3_120 = arith.constant 3 : index
    %c0_121 = arith.constant 0 : index
    %160 = vector.load %arg4[%c3_120, %c0_121] : memref<8x128xf32, #tpu.memory_space<vmem>>, vector<1x128xf32>
    %161 = vector.broadcast %160 : vector<1x128xf32> to vector<2x128xf32>
    %162 = arith.addf %159, %161 : vector<2x128xf32>
    %cst_122 = arith.constant 0.000000e+00 : f32
    %163 = vector.broadcast %cst_122 : f32 to vector<2x128xf32>
    %164 = arith.maximumf %162, %163 : vector<2x128xf32>
    %165 = arith.truncf %164 : vector<2x128xf32> to vector<2x128xbf16>
    %c6 = arith.constant 6 : index
    %c0_123 = arith.constant 0 : index
    %c0_124 = arith.constant 0 : index
    %166 = vector.load %arg3[%c6, %c0_123, %c0_124] : memref<8x128x128xbf16, #tpu.memory_space<vmem>>, vector<1x128x128xbf16>
    %167 = vector.shape_cast %166 : vector<1x128x128xbf16> to vector<128x128xbf16>
    %cst_125 = arith.constant dense<0.000000e+00> : vector<2x128xf32>
    %168 = tpu.matmul %165, %167, %cst_125 {dimension_numbers = #tpu.dot_dimension_numbers<[1], [0], [0], [1], [0, 0, 1, 1], [], []>} : vector<2x128xbf16>, vector<128x128xbf16>, vector<2x128xf32> -> vector<2x128xf32>
    %c4_126 = arith.constant 4 : index
    %c0_127 = arith.constant 0 : index
    %169 = vector.load %arg4[%c4_126, %c0_127] : memref<8x128xf32, #tpu.memory_space<vmem>>, vector<1x128xf32>
    %170 = vector.broadcast %169 : vector<1x128xf32> to vector<2x128xf32>
    %171 = arith.addf %168, %170 : vector<2x128xf32>
    %c0_128 = arith.constant 0 : index
    %c0_129 = arith.constant 0 : index
    %172 = vector.load %arg5[%c0_128, %c0_129] : memref<2x128xf32, #tpu.memory_space<vmem>>, vector<2x128xf32>
    tpu.vector_store %arg5[%c0_128, %c0_129], %171 {strides = array<i32>} : memref<2x128xf32, #tpu.memory_space<vmem>>, vector<2x128xf32>,
    return
  }
  func.func @transform_0(%arg0: i32) -> (i32, i32, i32, i32) {
    %c0_i32 = arith.constant 0 : i32
    %c0_i32_0 = arith.constant 0 : i32
    %c0_i32_1 = arith.constant 0 : i32
    %c0_i32_2 = arith.constant 0 : i32
    return %arg0, %c0_i32, %c0_i32_0, %c0_i32_1 : i32, i32, i32, i32
  }
  func.func @transform_1(%arg0: i32) -> (i32, i32, i32, i32) {
    %c0_i32 = arith.constant 0 : i32
    %c0_i32_0 = arith.constant 0 : i32
    %c0_i32_1 = arith.constant 0 : i32
    %c0_i32_2 = arith.constant 0 : i32
    %c0_i32_3 = arith.constant 0 : i32
    return %c0_i32, %c0_i32_0, %c0_i32_1, %c0_i32_2 : i32, i32, i32, i32
  }
  func.func @transform_2(%arg0: i32) -> (i32, i32, i32) {
    %c0_i32 = arith.constant 0 : i32
    %c0_i32_0 = arith.constant 0 : i32
    %c0_i32_1 = arith.constant 0 : i32
    %c0_i32_2 = arith.constant 0 : i32
    return %c0_i32, %c0_i32_0, %c0_i32_1 : i32, i32, i32
  }
  func.func @transform_3(%arg0: i32) -> (i32, i32) {
    %c0_i32 = arith.constant 0 : i32
    %c0_i32_0 = arith.constant 0 : i32
    %c0_i32_1 = arith.constant 0 : i32
    return %c0_i32, %c0_i32_0 : i32, i32
  }
  func.func @transform_4(%arg0: i32) -> (i32, i32) {
    %c0_i32 = arith.constant 0 : i32
    %c0_i32_0 = arith.constant 0 : i32
    return %arg0, %c0_i32 : i32, i32
  }
}

</mosaic_0001>

<llo_original>
// kernel: custom_connet_forward.1
$region0: #{custom_connet_forward.1}
  #allocation0 [shape = 'u32[]', space=smem, size = 0x4, offset = 0x4, fixed_abs, tag = 'smem constant byte address 0x4 - core index']
  #allocation1 [shape = 'u32[144,128]{1,0:T(1,128)}', space=vmem, size = 0x12000, scoped, tag = 'internal scratch']
  #allocation2 [shape = 'f32[40,128]{1,0:T(8,128)}', space=vmem, size = 0x5000, scoped, tag = 'scratch operand']
  %s0 = inlined_call_operand.vmem [shape: bf16[1,5,64,128], index: 0, kind: input, shape index: {}]
  %s1 = inlined_call_operand.vmem [shape: bf16[2,5,128,256], index: 1, kind: input, shape index: {}]
  %s2 = inlined_call_operand.hbm [shape: bf16[8,128,128], index: 2, kind: input, shape index: {}]
  %s3 = inlined_call_operand.vmem [shape: f32[8,128], index: 3, kind: input, shape index: {}]
  %s4 = inlined_call_operand.hbm [shape: f32[2,128], index: 4, kind: output, shape index: {}]
  %s5 = sld [smem:[#allocation0]]
  $region30: #{custom_connet_forward.1} parent=0
    _
  %s7 = ssub.s32 1, %s5
  %s8 = scalar_select 0, %s7, %s5
  $region1: #{custom_connet_forward.1} parent=0
    #allocation3 [shape = 'u8[262144]{0}', space=vmem, size = 0x40000, scoped, tag = 'input window, operand 2, single buffered']
    #allocation4 [shape = 's32[1]{0}', space=sflag, size = 0x4, scoped, tag = 'scoped memory for custom_connet_forward.1']
    #allocation5 [shape = 's32[1]{0}', space=sflag, size = 0x4, scoped, tag = 'scoped memory for custom_connet_forward.1']
    #allocation6 [shape = 'u8[1024]{0}', space=vmem, size = 0x400, scoped, tag = 'output window, operand 0, single buffered']
    %9 = vsyncpa [#allocation4], 0
    %10 = vsyncpa [#allocation5], 0
    // Predicated region
    $region2: #{custom_connet_forward.1} parent=1 // pred_check
      _
    $region3: #{custom_connet_forward.1} parent=1 // pred_check_branch
      %12 = sbr.rel (0) target = $region5
    $region4: #{custom_connet_forward.1} parent=1 // pred_region
      _
    $region5: #{custom_connet_forward.1} parent=1 // pred_fallthru
      _
    // Predicated region
    $region6: #{custom_connet_forward.1} parent=1 // pred_check
      _
    $region7: #{custom_connet_forward.1} parent=1 // pred_check_branch
      %14 = sbr.rel (0) target = $region9
    $region8: #{custom_connet_forward.1} parent=1 // pred_region
      _
    $region9: #{custom_connet_forward.1} parent=1 // pred_fallthru
      _
    // Predicated region
    $region10: #{custom_connet_forward.1} parent=1 // pred_check
      _
    $region11: #{custom_connet_forward.1} parent=1 // pred_check_branch
      %16 = sbr.rel (0) target = $region13
    $region12: #{custom_connet_forward.1} parent=1 // pred_region
      %s18 = ssub.s32 8192, 8192
      %19 = vsyncadd [#allocation4], %s18
      %s20 = sshll.u32 [#allocation3], 4
      %s21 = int_to_ptr.vmem [resolvable:$true] %s20
      %26 = dma.hbm_to_vmem [thread:$0]  %s2, 8192, %s21, [#allocation4], 64, 64, 4
    $region13: #{custom_connet_forward.1} parent=1 // pred_fallthru
      _
    // Predicated region
    $region14: #{custom_connet_forward.1} parent=1 // pred_check
      _
    $region15: #{custom_connet_forward.1} parent=1 // pred_check_branch
      %28 = sbr.rel (0) target = $region17
    $region16: #{custom_connet_forward.1} parent=1 // pred_region
      _
    $region17: #{custom_connet_forward.1} parent=1 // pred_fallthru
      _
    // Predicated region
    $region18: #{custom_connet_forward.1} parent=1 // pred_check
      _
    $region19: #{custom_connet_forward.1} parent=1 // pred_check_branch
      %30 = sbr.rel (0) target = $region21
    $region20: #{custom_connet_forward.1} parent=1 // pred_region
      %31 = dma.done [#allocation4], 8192
    $region21: #{custom_connet_forward.1} parent=1 // pred_fallthru
      _
    %v33 = vld [vmem:[%s0] sm:$0xf]
    %v34 = vld [vmem:[%s0 + $0x4] sm:$0xf]
    %v35 = vld [vmem:[%s0 + $0x8] sm:$0xf]
    %v36 = vld [vmem:[%s0 + $0xc] sm:$0xf]
    %v37 = vld [vmem:[%s0 + $0x10] sm:$0xf]
    %v38 = vld [vmem:[%s0 + $0x14] sm:$0xf]
    %v39 = vld [vmem:[%s0 + $0x18] sm:$0xf]
    %v40 = vld [vmem:[%s0 + $0x1c] sm:$0xf]
    %v41 = vld [vmem:[%s1] sm:$0xff]
    %v42 = vld [vmem:[%s1 + $0x8] sm:$0xff]
    %v43 = vld [vmem:[%s1 + $0x10] sm:$0xff]
    %v44 = vld [vmem:[%s1 + $0x18] sm:$0xff]
    %v45 = vld [vmem:[%s1 + $0x20] sm:$0xff]
    %v46 = vld [vmem:[%s1 + $0x28] sm:$0xff]
    %v47 = vld [vmem:[%s1 + $0x30] sm:$0xff]
    %v48 = vld [vmem:[%s1 + $0x38] sm:$0xff]
    %v49 = vld [vmem:[%s1 + $0x40] sm:$0xff]
    %v50 = vld [vmem:[%s1 + $0x48] sm:$0xff]
    %v51 = vld [vmem:[%s1 + $0x50] sm:$0xff]
    %v52 = vld [vmem:[%s1 + $0x58] sm:$0xff]
    %v53 = vld [vmem:[%s1 + $0x60] sm:$0xff]
    %v54 = vld [vmem:[%s1 + $0x68] sm:$0xff]
    %v55 = vld [vmem:[%s1 + $0x70] sm:$0xff]
    %v56 = vld [vmem:[%s1 + $0x78] sm:$0xff]
    %s57 = scalar_lea.vmem %s0, 32
    %v58 = vld [vmem:[%s57] sm:$0xf]
    %v59 = vld [vmem:[%s57 + $0x4] sm:$0xf]
    %v60 = vld [vmem:[%s57 + $0x8] sm:$0xf]
    %v61 = vld [vmem:[%s57 + $0xc] sm:$0xf]
    %v62 = vld [vmem:[%s57 + $0x10] sm:$0xf]
    %v63 = vld [vmem:[%s57 + $0x14] sm:$0xf]
    %v64 = vld [vmem:[%s57 + $0x18] sm:$0xf]
    %v65 = vld [vmem:[%s57 + $0x1c] sm:$0xf]
    %s66 = scalar_lea.vmem %s1, 128
    %v67 = vld [vmem:[%s66] sm:$0xff]
    %v68 = vld [vmem:[%s66 + $0x8] sm:$0xff]
    %v69 = vld [vmem:[%s66 + $0x10] sm:$0xff]
    %v70 = vld [vmem:[%s66 + $0x18] sm:$0xff]
    %v71 = vld [vmem:[%s66 + $0x20] sm:$0xff]
    %v72 = vld [vmem:[%s66 + $0x28] sm:$0xff]
    %v73 = vld [vmem:[%s66 + $0x30] sm:$0xff]
    %v74 = vld [vmem:[%s66 + $0x38] sm:$0xff]
    %v75 = vld [vmem:[%s66 + $0x40] sm:$0xff]
    %v76 = vld [vmem:[%s66 + $0x48] sm:$0xff]
    %v77 = vld [vmem:[%s66 + $0x50] sm:$0xff]
    %v78 = vld [vmem:[%s66 + $0x58] sm:$0xff]
    %v79 = vld [vmem:[%s66 + $0x60] sm:$0xff]
    %v80 = vld [vmem:[%s66 + $0x68] sm:$0xff]
    %v81 = vld [vmem:[%s66 + $0x70] sm:$0xff]
    %v82 = vld [vmem:[%s66 + $0x78] sm:$0xff]
    %v91 = vunpack.c.l.b16 %v58
    %v92 = vunpack.c.l.b16 %v59
    %v93 = vunpack.c.l.b16 %v60
    %v94 = vunpack.c.l.b16 %v61
    %v95 = vunpack.c.l.b16 %v62
    %v96 = vunpack.c.l.b16 %v63
    %v97 = vunpack.c.l.b16 %v64
    %v98 = vunpack.c.l.b16 %v65
    %v99 = vpack.c.b16 %v92, %v91
    %v100 = vpack.c.b16 %v94, %v93
    %v101 = vpack.c.b16 %v96, %v95
    %v102 = vpack.c.b16 %v98, %v97
    %v123 = vunpack.c.l.b16 %v67
    %v124 = vunpack.c.h.b16 %v67
    %v125 = vunpack.c.l.b16 %v68
    %v126 = vunpack.c.h.b16 %v68
    %v127 = vunpack.c.l.b16 %v69
    %v128 = vunpack.c.h.b16 %v69
    %v129 = vunpack.c.l.b16 %v70
    %v130 = vunpack.c.h.b16 %v70
    %v131 = vunpack.c.l.b16 %v71
    %v132 = vunpack.c.h.b16 %v71
    %v133 = vunpack.c.l.b16 %v72
    %v134 = vunpack.c.h.b16 %v72
    %v135 = vunpack.c.l.b16 %v73
    %v136 = vunpack.c.h.b16 %v73
    %v137 = vunpack.c.l.b16 %v74
    %v138 = vunpack.c.h.b16 %v74
    %v139 = vunpack.c.l.b16 %v75
    %v140 = vunpack.c.h.b16 %v75
    %v141 = vunpack.c.l.b16 %v76
    %v142 = vunpack.c.h.b16 %v76
    %v143 = vunpack.c.l.b16 %v77
    %v144 = vunpack.c.h.b16 %v77
    %v145 = vunpack.c.l.b16 %v78
    %v146 = vunpack.c.h.b16 %v78
    %v147 = vunpack.c.l.b16 %v79
    %v148 = vunpack.c.h.b16 %v79
    %v149 = vunpack.c.l.b16 %v80
    %v150 = vunpack.c.h.b16 %v80
    %v151 = vunpack.c.l.b16 %v81
    %v152 = vunpack.c.h.b16 %v81
    %v153 = vunpack.c.l.b16 %v82
    %v154 = vunpack.c.h.b16 %v82
    %v155 = vpack.c.b16 %v125, %v123
    %v156 = vpack.c.b16 %v126, %v124
    %v157 = vpack.c.b16 %v129, %v127
    %v158 = vpack.c.b16 %v130, %v128
    %v159 = vpack.c.b16 %v133, %v131
    %v160 = vpack.c.b16 %v134, %v132
    %v161 = vpack.c.b16 %v137, %v135
    %v162 = vpack.c.b16 %v138, %v136
    %v163 = vpack.c.b16 %v141, %v139
    %v164 = vpack.c.b16 %v142, %v140
    %v165 = vpack.c.b16 %v145, %v143
    %v166 = vpack.c.b16 %v146, %v144
    %v167 = vpack.c.b16 %v149, %v147
    %v168 = vpack.c.b16 %v150, %v148
    %v169 = vpack.c.b16 %v153, %v151
    %v170 = vpack.c.b16 %v154, %v152
    %187 = vmatprep.subr.bf16.mxu0 %v156
    %188 = vmatpush1.bf16.msra.mxu0 %v155
    %189 = vmatprep.subr.bf16.mxu0 %v158
    %190 = vmatpush1.bf16.msra.mxu0 %v157
    %191 = vmatprep.subr.bf16.mxu0 %v160
    %192 = vmatpush1.bf16.msra.mxu0 %v159
    %193 = vmatprep.subr.bf16.mxu0 %v162
    %194 = vmatpush1.bf16.msra.mxu0 %v161
    %195 = vmatprep.subr.bf16.mxu0 %v164
    %196 = vmatpush1.bf16.msra.mxu0 %v163
    %197 = vmatprep.subr.bf16.mxu0 %v166
    %198 = vmatpush1.bf16.msra.mxu0 %v165
    %199 = vmatprep.subr.bf16.mxu0 %v168
    %200 = vmatpush1.bf16.msra.mxu0 %v167
    %201 = vmatprep.subr.bf16.mxu0 %v170
    %202 = vmatpush1.bf16.msra.mxu0 %v169
    %203 = vmatprep.subr.bf16.mxu0 0
    %204 = vmatpush1.bf16.msra.mxu0 0
    %205 = vmatprep.subr.bf16.mxu0 0
    %206 = vmatpush1.bf16.msra.mxu0 0
    %207 = vmatprep.subr.bf16.mxu0 0
    %208 = vmatpush1.bf16.msra.mxu0 0
    %209 = vmatprep.subr.bf16.mxu0 0
    %210 = vmatpush1.bf16.msra.mxu0 0
    %211 = vmatprep.subr.bf16.mxu0 0
    %212 = vmatpush1.bf16.msra.mxu0 0
    %213 = vmatprep.subr.bf16.mxu0 0
    %214 = vmatpush1.bf16.msra.mxu0 0
    %215 = vmatprep.subr.bf16.mxu0 0
    %216 = vmatpush1.bf16.msra.mxu0 0
    %217 = vmatprep.subr.bf16.mxu0 0
    %218 = vmatpush1.bf16.msra.mxu0 0
    %219 = vmatprep.mubr.bf16.mxu0 0
    %220 = vmatmul.mubr.bf16.gmra.mrb[0].mxu0 %v99
    %v221 = vpop.f32.mrb[0].mxu0
    %v222 = vadd.f32 0.0, %v221
    %v223 = vpop.f32.mrb[0].mxu0
    %v224 = vadd.f32 0.0, %v223
    %v225 = vpop.f32.mrb[0].mxu0
    %v226 = vadd.f32 0.0, %v225
    %v227 = vpop.f32.mrb[0].mxu0
    %v228 = vadd.f32 0.0, %v227
    %229 = vmatprep.mubr.bf16.mxu0 0
    %230 = vmatmul.mubr.bf16.gmra.mrb[0].mxu0 %v100
    %v231 = vpop.f32.mrb[0].mxu0
    %v232 = vadd.f32 0.0, %v231
    %v233 = vpop.f32.mrb[0].mxu0
    %v234 = vadd.f32 0.0, %v233
    %v235 = vpop.f32.mrb[0].mxu0
    %v236 = vadd.f32 0.0, %v235
    %v237 = vpop.f32.mrb[0].mxu0
    %v238 = vadd.f32 0.0, %v237
    %239 = vmatprep.mubr.bf16.mxu0 0
    %240 = vmatmul.mubr.bf16.gmra.mrb[0].mxu0 %v101
    %v241 = vpop.f32.mrb[0].mxu0
    %v242 = vadd.f32 0.0, %v241
    %v243 = vpop.f32.mrb[0].mxu0
    %v244 = vadd.f32 0.0, %v243
    %v245 = vpop.f32.mrb[0].mxu0
    %v246 = vadd.f32 0.0, %v245
    %v247 = vpop.f32.mrb[0].mxu0
    %v248 = vadd.f32 0.0, %v247
    %249 = vmatprep.mubr.bf16.mxu0 0
    %250 = vmatmul.mubr.bf16.gmra.mrb[0].mxu0 %v102
    %v251 = vpop.f32.mrb[0].mxu0
    %v252 = vadd.f32 0.0, %v251
    %v253 = vpop.f32.mrb[0].mxu0
    %v254 = vadd.f32 0.0, %v253
    %v255 = vpop.f32.mrb[0].mxu0
    %v256 = vadd.f32 0.0, %v255
    %v257 = vpop.f32.mrb[0].mxu0
    %v258 = vadd.f32 0.0, %v257
    %259 = vdwg.mxu0
    %v268 = vunpack.c.l.b16 %v33
    %v269 = vunpack.c.l.b16 %v34
    %v270 = vunpack.c.l.b16 %v35
    %v271 = vunpack.c.l.b16 %v36
    %v272 = vunpack.c.l.b16 %v37
    %v273 = vunpack.c.l.b16 %v38
    %v274 = vunpack.c.l.b16 %v39
    %v275 = vunpack.c.l.b16 %v40
    %v276 = vpack.c.b16 %v269, %v268
    %v277 = vpack.c.b16 %v271, %v270
    %v278 = vpack.c.b16 %v273, %v272
    %v279 = vpack.c.b16 %v275, %v274
    %v300 = vunpack.c.l.b16 %v41
    %v301 = vunpack.c.h.b16 %v41
    %v302 = vunpack.c.l.b16 %v42
    %v303 = vunpack.c.h.b16 %v42
    %v304 = vunpack.c.l.b16 %v43
    %v305 = vunpack.c.h.b16 %v43
    %v306 = vunpack.c.l.b16 %v44
    %v307 = vunpack.c.h.b16 %v44
    %v308 = vunpack.c.l.b16 %v45
    %v309 = vunpack.c.h.b16 %v45
    %v310 = vunpack.c.l.b16 %v46
    %v311 = vunpack.c.h.b16 %v46
    %v312 = vunpack.c.l.b16 %v47
    %v313 = vunpack.c.h.b16 %v47
    %v314 = vunpack.c.l.b16 %v48
    %v315 = vunpack.c.h.b16 %v48
    %v316 = vunpack.c.l.b16 %v49
    %v317 = vunpack.c.h.b16 %v49
    %v318 = vunpack.c.l.b16 %v50
    %v319 = vunpack.c.h.b16 %v50
    %v320 = vunpack.c.l.b16 %v51
    %v321 = vunpack.c.h.b16 %v51
    %v322 = vunpack.c.l.b16 %v52
    %v323 = vunpack.c.h.b16 %v52
    %v324 = vunpack.c.l.b16 %v53
    %v325 = vunpack.c.h.b16 %v53
    %v326 = vunpack.c.l.b16 %v54
    %v327 = vunpack.c.h.b16 %v54
    %v328 = vunpack.c.l.b16 %v55
    %v329 = vunpack.c.h.b16 %v55
    %v330 = vunpack.c.l.b16 %v56
    %v331 = vunpack.c.h.b16 %v56
    %v332 = vpack.c.b16 %v302, %v300
    %v333 = vpack.c.b16 %v303, %v301
    %v334 = vpack.c.b16 %v306, %v304
    %v335 = vpack.c.b16 %v307, %v305
    %v336 = vpack.c.b16 %v310, %v308
    %v337 = vpack.c.b16 %v311, %v309
    %v338 = vpack.c.b16 %v314, %v312
    %v339 = vpack.c.b16 %v315, %v313
    %v340 = vpack.c.b16 %v318, %v316
    %v341 = vpack.c.b16 %v319, %v317
    %v342 = vpack.c.b16 %v322, %v320
    %v343 = vpack.c.b16 %v323, %v321
    %v344 = vpack.c.b16 %v326, %v324
    %v345 = vpack.c.b16 %v327, %v325
    %v346 = vpack.c.b16 %v330, %v328
    %v347 = vpack.c.b16 %v331, %v329
    %364 = vmatprep.subr.bf16.mxu0 %v333
    %365 = vmatpush1.bf16.msra.mxu0 %v332
    %366 = vmatprep.subr.bf16.mxu0 %v335
    %367 = vmatpush1.bf16.msra.mxu0 %v334
    %368 = vmatprep.subr.bf16.mxu0 %v337
    %369 = vmatpush1.bf16.msra.mxu0 %v336
    %370 = vmatprep.subr.bf16.mxu0 %v339
    %371 = vmatpush1.bf16.msra.mxu0 %v338
    %372 = vmatprep.subr.bf16.mxu0 %v341
    %373 = vmatpush1.bf16.msra.mxu0 %v340
    %374 = vmatprep.subr.bf16.mxu0 %v343
    %375 = vmatpush1.bf16.msra.mxu0 %v342
    %376 = vmatprep.subr.bf16.mxu0 %v345
    %377 = vmatpush1.bf16.msra.mxu0 %v344
    %378 = vmatprep.subr.bf16.mxu0 %v347
    %379 = vmatpush1.bf16.msra.mxu0 %v346
    %380 = vmatprep.subr.bf16.mxu0 0
    %381 = vmatpush1.bf16.msra.mxu0 0
    %382 = vmatprep.subr.bf16.mxu0 0
    %383 = vmatpush1.bf16.msra.mxu0 0
    %384 = vmatprep.subr.bf16.mxu0 0
    %385 = vmatpush1.bf16.msra.mxu0 0
    %386 = vmatprep.subr.bf16.mxu0 0
    %387 = vmatpush1.bf16.msra.mxu0 0
    %388 = vmatprep.subr.bf16.mxu0 0
    %389 = vmatpush1.bf16.msra.mxu0 0
    %390 = vmatprep.subr.bf16.mxu0 0
    %391 = vmatpush1.bf16.msra.mxu0 0
    %392 = vmatprep.subr.bf16.mxu0 0
    %393 = vmatpush1.bf16.msra.mxu0 0
    %394 = vmatprep.subr.bf16.mxu0 0
    %395 = vmatpush1.bf16.msra.mxu0 0
    %396 = vmatprep.mubr.bf16.mxu0 0
    %397 = vmatmul.mubr.bf16.gmra.mrb[0].mxu0 %v276
    %v398 = vpop.f32.mrb[0].mxu0
    %v399 = vadd.f32 %v222, %v398
    %v400 = vpop.f32.mrb[0].mxu0
    %v401 = vadd.f32 %v224, %v400
    %v402 = vpop.f32.mrb[0].mxu0
    %v403 = vadd.f32 %v226, %v402
    %v404 = vpop.f32.mrb[0].mxu0
    %v405 = vadd.f32 %v228, %v404
    %406 = vmatprep.mubr.bf16.mxu0 0
    %407 = vmatmul.mubr.bf16.gmra.mrb[0].mxu0 %v277
    %v408 = vpop.f32.mrb[0].mxu0
    %v409 = vadd.f32 %v232, %v408
    %v410 = vpop.f32.mrb[0].mxu0
    %v411 = vadd.f32 %v234, %v410
    %v412 = vpop.f32.mrb[0].mxu0
    %v413 = vadd.f32 %v236, %v412
    %v414 = vpop.f32.mrb[0].mxu0
    %v415 = vadd.f32 %v238, %v414
    %416 = vmatprep.mubr.bf16.mxu0 0
    %417 = vmatmul.mubr.bf16.gmra.mrb[0].mxu0 %v278
    %v418 = vpop.f32.mrb[0].mxu0
    %v419 = vadd.f32 %v242, %v418
    %v420 = vpop.f32.mrb[0].mxu0
    %v421 = vadd.f32 %v244, %v420
    %v422 = vpop.f32.mrb[0].mxu0
    %v423 = vadd.f32 %v246, %v422
    %v424 = vpop.f32.mrb[0].mxu0
    %v425 = vadd.f32 %v248, %v424
    %426 = vmatprep.mubr.bf16.mxu0 0
    %427 = vmatmul.mubr.bf16.gmra.mrb[0].mxu0 %v279
    %v428 = vpop.f32.mrb[0].mxu0
    %v429 = vadd.f32 %v252, %v428
    %v430 = vpop.f32.mrb[0].mxu0
    %v431 = vadd.f32 %v254, %v430
    %v432 = vpop.f32.mrb[0].mxu0
    %v433 = vadd.f32 %v256, %v432
    %v434 = vpop.f32.mrb[0].mxu0
    %v435 = vadd.f32 %v258, %v434
    %436 = vdwg.mxu0
    %s437 = scalar_lea.vmem %s0, 64
    %v438 = vld [vmem:[%s437] sm:$0xf]
    %v439 = vld [vmem:[%s437 + $0x4] sm:$0xf]
    %v440 = vld [vmem:[%s437 + $0x8] sm:$0xf]
    %v441 = vld [vmem:[%s437 + $0xc] sm:$0xf]
    %v442 = vld [vmem:[%s437 + $0x10] sm:$0xf]
    %v443 = vld [vmem:[%s437 + $0x14] sm:$0xf]
    %v444 = vld [vmem:[%s437 + $0x18] sm:$0xf]
    %v445 = vld [vmem:[%s437 + $0x1c] sm:$0xf]
    %s446 = scalar_lea.vmem %s1, 256
    %v447 = vld [vmem:[%s446] sm:$0xff]
    %v448 = vld [vmem:[%s446 + $0x8] sm:$0xff]
    %v449 = vld [vmem:[%s446 + $0x10] sm:$0xff]
    %v450 = vld [vmem:[%s446 + $0x18] sm:$0xff]
    %v451 = vld [vmem:[%s446 + $0x20] sm:$0xff]
    %v452 = vld [vmem:[%s446 + $0x28] sm:$0xff]
    %v453 = vld [vmem:[%s446 + $0x30] sm:$0xff]
    %v454 = vld [vmem:[%s446 + $0x38] sm:$0xff]
    %v455 = vld [vmem:[%s446 + $0x40] sm:$0xff]
    %v456 = vld [vmem:[%s446 + $0x48] sm:$0xff]
    %v457 = vld [vmem:[%s446 + $0x50] sm:$0xff]
    %v458 = vld [vmem:[%s446 + $0x58] sm:$0xff]
    %v459 = vld [vmem:[%s446 + $0x60] sm:$0xff]
    %v460 = vld [vmem:[%s446 + $0x68] sm:$0xff]
    %v461 = vld [vmem:[%s446 + $0x70] sm:$0xff]
    %v462 = vld [vmem:[%s446 + $0x78] sm:$0xff]
    %v471 = vunpack.c.l.b16 %v438
    %v472 = vunpack.c.l.b16 %v439
    %v473 = vunpack.c.l.b16 %v440
    %v474 = vunpack.c.l.b16 %v441
    %v475 = vunpack.c.l.b16 %v442
    %v476 = vunpack.c.l.b16 %v443
    %v477 = vunpack.c.l.b16 %v444
    %v478 = vunpack.c.l.b16 %v445
    %v479 = vpack.c.b16 %v472, %v471
    %v480 = vpack.c.b16 %v474, %v473
    %v481 = vpack.c.b16 %v476, %v475
    %v482 = vpack.c.b16 %v478, %v477
    %v503 = vunpack.c.l.b16 %v447
    %v504 = vunpack.c.h.b16 %v447
    %v505 = vunpack.c.l.b16 %v448
    %v506 = vunpack.c.h.b16 %v448
    %v507 = vunpack.c.l.b16 %v449
    %v508 = vunpack.c.h.b16 %v449
    %v509 = vunpack.c.l.b16 %v450
    %v510 = vunpack.c.h.b16 %v450
    %v511 = vunpack.c.l.b16 %v451
    %v512 = vunpack.c.h.b16 %v451
    %v513 = vunpack.c.l.b16 %v452
    %v514 = vunpack.c.h.b16 %v452
    %v515 = vunpack.c.l.b16 %v453
    %v516 = vunpack.c.h.b16 %v453
    %v517 = vunpack.c.l.b16 %v454
    %v518 = vunpack.c.h.b16 %v454
    %v519 = vunpack.c.l.b16 %v455
    %v520 = vunpack.c.h.b16 %v455
    %v521 = vunpack.c.l.b16 %v456
    %v522 = vunpack.c.h.b16 %v456
    %v523 = vunpack.c.l.b16 %v457
    %v524 = vunpack.c.h.b16 %v457
    %v525 = vunpack.c.l.b16 %v458
    %v526 = vunpack.c.h.b16 %v458
    %v527 = vunpack.c.l.b16 %v459
    %v528 = vunpack.c.h.b16 %v459
    %v529 = vunpack.c.l.b16 %v460
    %v530 = vunpack.c.h.b16 %v460
    %v531 = vunpack.c.l.b16 %v461
    %v532 = vunpack.c.h.b16 %v461
    %v533 = vunpack.c.l.b16 %v462
    %v534 = vunpack.c.h.b16 %v462
    %v535 = vpack.c.b16 %v505, %v503
    %v536 = vpack.c.b16 %v506, %v504
    %v537 = vpack.c.b16 %v509, %v507
    %v538 = vpack.c.b16 %v510, %v508
    %v539 = vpack.c.b16 %v513, %v511
    %v540 = vpack.c.b16 %v514, %v512
    %v541 = vpack.c.b16 %v517, %v515
    %v542 = vpack.c.b16 %v518, %v516
    %v543 = vpack.c.b16 %v521, %v519
    %v544 = vpack.c.b16 %v522, %v520
    %v545 = vpack.c.b16 %v525, %v523
    %v546 = vpack.c.b16 %v526, %v524
    %v547 = vpack.c.b16 %v529, %v527
    %v548 = vpack.c.b16 %v530, %v528
    %v549 = vpack.c.b16 %v533, %v531
    %v550 = vpack.c.b16 %v534, %v532
    %567 = vmatprep.subr.bf16.mxu0 %v536
    %568 = vmatpush1.bf16.msra.mxu0 %v535
    %569 = vmatprep.subr.bf16.mxu0 %v538
    %570 = vmatpush1.bf16.msra.mxu0 %v537
    %571 = vmatprep.subr.bf16.mxu0 %v540
    %572 = vmatpush1.bf16.msra.mxu0 %v539
    %573 = vmatprep.subr.bf16.mxu0 %v542
    %574 = vmatpush1.bf16.msra.mxu0 %v541
    %575 = vmatprep.subr.bf16.mxu0 %v544
    %576 = vmatpush1.bf16.msra.mxu0 %v543
    %577 = vmatprep.subr.bf16.mxu0 %v546
    %578 = vmatpush1.bf16.msra.mxu0 %v545
    %579 = vmatprep.subr.bf16.mxu0 %v548
    %580 = vmatpush1.bf16.msra.mxu0 %v547
    %581 = vmatprep.subr.bf16.mxu0 %v550
    %582 = vmatpush1.bf16.msra.mxu0 %v549
    %583 = vmatprep.subr.bf16.mxu0 0
    %584 = vmatpush1.bf16.msra.mxu0 0
    %585 = vmatprep.subr.bf16.mxu0 0
    %586 = vmatpush1.bf16.msra.mxu0 0
    %587 = vmatprep.subr.bf16.mxu0 0
    %588 = vmatpush1.bf16.msra.mxu0 0
    %589 = vmatprep.subr.bf16.mxu0 0
    %590 = vmatpush1.bf16.msra.mxu0 0
    %591 = vmatprep.subr.bf16.mxu0 0
    %592 = vmatpush1.bf16.msra.mxu0 0
    %593 = vmatprep.subr.bf16.mxu0 0
    %594 = vmatpush1.bf16.msra.mxu0 0
    %595 = vmatprep.subr.bf16.mxu0 0
    %596 = vmatpush1.bf16.msra.mxu0 0
    %597 = vmatprep.subr.bf16.mxu0 0
    %598 = vmatpush1.bf16.msra.mxu0 0
    %599 = vmatprep.mubr.bf16.mxu0 0
    %600 = vmatmul.mubr.bf16.gmra.mrb[0].mxu0 %v479
    %v601 = vpop.f32.mrb[0].mxu0
    %v602 = vadd.f32 0.0, %v601
    %v603 = vpop.f32.mrb[0].mxu0
    %v604 = vadd.f32 0.0, %v603
    %v605 = vpop.f32.mrb[0].mxu0
    %v606 = vadd.f32 0.0, %v605
    %v607 = vpop.f32.mrb[0].mxu0
    %v608 = vadd.f32 0.0, %v607
    %609 = vmatprep.mubr.bf16.mxu0 0
    %610 = vmatmul.mubr.bf16.gmra.mrb[0].mxu0 %v480
    %v611 = vpop.f32.mrb[0].mxu0
    %v612 = vadd.f32 0.0, %v611
    %v613 = vpop.f32.mrb[0].mxu0
    %v614 = vadd.f32 0.0, %v613
    %v615 = vpop.f32.mrb[0].mxu0
    %v616 = vadd.f32 0.0, %v615
    %v617 = vpop.f32.mrb[0].mxu0
    %v618 = vadd.f32 0.0, %v617
    %619 = vmatprep.mubr.bf16.mxu0 0
    %620 = vmatmul.mubr.bf16.gmra.mrb[0].mxu0 %v481
    %v621 = vpop.f32.mrb[0].mxu0
    %v622 = vadd.f32 0.0, %v621
    %v623 = vpop.f32.mrb[0].mxu0
    %v624 = vadd.f32 0.0, %v623
    %v625 = vpop.f32.mrb[0].mxu0
    %v626 = vadd.f32 0.0, %v625
    %v627 = vpop.f32.mrb[0].mxu0
    %v628 = vadd.f32 0.0, %v627
    %629 = vmatprep.mubr.bf16.mxu0 0
    %630 = vmatmul.mubr.bf16.gmra.mrb[0].mxu0 %v482
    %v631 = vpop.f32.mrb[0].mxu0
    %v632 = vadd.f32 0.0, %v631
    %v633 = vpop.f32.mrb[0].mxu0
    %v634 = vadd.f32 0.0, %v633
    %v635 = vpop.f32.mrb[0].mxu0
    %v636 = vadd.f32 0.0, %v635
    %v637 = vpop.f32.mrb[0].mxu0
    %v638 = vadd.f32 0.0, %v637
    %639 = vdwg.mxu0
    %v640 = vadd.f32 %v399, %v602
    %v641 = vadd.f32 %v401, %v604
    %v642 = vadd.f32 %v403, %v606
    %v643 = vadd.f32 %v405, %v608
    %v644 = vadd.f32 %v409, %v612
    %v645 = vadd.f32 %v411, %v614
    %v646 = vadd.f32 %v413, %v616
    %v647 = vadd.f32 %v415, %v618
    %v648 = vadd.f32 %v419, %v622
    %v649 = vadd.f32 %v421, %v624
    %v650 = vadd.f32 %v423, %v626
    %v651 = vadd.f32 %v425, %v628
    %v652 = vadd.f32 %v429, %v632
    %v653 = vadd.f32 %v431, %v634
    %v654 = vadd.f32 %v433, %v636
    %v655 = vadd.f32 %v435, %v638
    %s656 = scalar_lea.vmem %s0, 96
    %v657 = vld [vmem:[%s656] sm:$0xf]
    %v658 = vld [vmem:[%s656 + $0x4] sm:$0xf]
    %v659 = vld [vmem:[%s656 + $0x8] sm:$0xf]
    %v660 = vld [vmem:[%s656 + $0xc] sm:$0xf]
    %v661 = vld [vmem:[%s656 + $0x10] sm:$0xf]
    %v662 = vld [vmem:[%s656 + $0x14] sm:$0xf]
    %v663 = vld [vmem:[%s656 + $0x18] sm:$0xf]
    %v664 = vld [vmem:[%s656 + $0x1c] sm:$0xf]
    %s665 = scalar_lea.vmem %s1, 384
    %v666 = vld [vmem:[%s665] sm:$0xff]
    %v667 = vld [vmem:[%s665 + $0x8] sm:$0xff]
    %v668 = vld [vmem:[%s665 + $0x10] sm:$0xff]
    %v669 = vld [vmem:[%s665 + $0x18] sm:$0xff]
    %v670 = vld [vmem:[%s665 + $0x20] sm:$0xff]
    %v671 = vld [vmem:[%s665 + $0x28] sm:$0xff]
    %v672 = vld [vmem:[%s665 + $0x30] sm:$0xff]
    %v673 = vld [vmem:[%s665 + $0x38] sm:$0xff]
    %v674 = vld [vmem:[%s665 + $0x40] sm:$0xff]
    %v675 = vld [vmem:[%s665 + $0x48] sm:$0xff]
    %v676 = vld [vmem:[%s665 + $0x50] sm:$0xff]
    %v677 = vld [vmem:[%s665 + $0x58] sm:$0xff]
    %v678 = vld [vmem:[%s665 + $0x60] sm:$0xff]
    %v679 = vld [vmem:[%s665 + $0x68] sm:$0xff]
    %v680 = vld [vmem:[%s665 + $0x70] sm:$0xff]
    %v681 = vld [vmem:[%s665 + $0x78] sm:$0xff]
    %v690 = vunpack.c.l.b16 %v657
    %v691 = vunpack.c.l.b16 %v658
    %v692 = vunpack.c.l.b16 %v659
    %v693 = vunpack.c.l.b16 %v660
    %v694 = vunpack.c.l.b16 %v661
    %v695 = vunpack.c.l.b16 %v662
    %v696 = vunpack.c.l.b16 %v663
    %v697 = vunpack.c.l.b16 %v664
    %v698 = vpack.c.b16 %v691, %v690
    %v699 = vpack.c.b16 %v693, %v692
    %v700 = vpack.c.b16 %v695, %v694
    %v701 = vpack.c.b16 %v697, %v696
    %v722 = vunpack.c.l.b16 %v666
    %v723 = vunpack.c.h.b16 %v666
    %v724 = vunpack.c.l.b16 %v667
    %v725 = vunpack.c.h.b16 %v667
    %v726 = vunpack.c.l.b16 %v668
    %v727 = vunpack.c.h.b16 %v668
    %v728 = vunpack.c.l.b16 %v669
    %v729 = vunpack.c.h.b16 %v669
    %v730 = vunpack.c.l.b16 %v670
    %v731 = vunpack.c.h.b16 %v670
    %v732 = vunpack.c.l.b16 %v671
    %v733 = vunpack.c.h.b16 %v671
    %v734 = vunpack.c.l.b16 %v672
    %v735 = vunpack.c.h.b16 %v672
    %v736 = vunpack.c.l.b16 %v673
    %v737 = vunpack.c.h.b16 %v673
    %v738 = vunpack.c.l.b16 %v674
    %v739 = vunpack.c.h.b16 %v674
    %v740 = vunpack.c.l.b16 %v675
    %v741 = vunpack.c.h.b16 %v675
    %v742 = vunpack.c.l.b16 %v676
    %v743 = vunpack.c.h.b16 %v676
    %v744 = vunpack.c.l.b16 %v677
    %v745 = vunpack.c.h.b16 %v677
    %v746 = vunpack.c.l.b16 %v678
    %v747 = vunpack.c.h.b16 %v678
    %v748 = vunpack.c.l.b16 %v679
    %v749 = vunpack.c.h.b16 %v679
    %v750 = vunpack.c.l.b16 %v680
    %v751 = vunpack.c.h.b16 %v680
    %v752 = vunpack.c.l.b16 %v681
    %v753 = vunpack.c.h.b16 %v681
    %v754 = vpack.c.b16 %v724, %v722
    %v755 = vpack.c.b16 %v725, %v723
    %v756 = vpack.c.b16 %v728, %v726
    %v757 = vpack.c.b16 %v729, %v727
    %v758 = vpack.c.b16 %v732, %v730
    %v759 = vpack.c.b16 %v733, %v731
    %v760 = vpack.c.b16 %v736, %v734
    %v761 = vpack.c.b16 %v737, %v735
    %v762 = vpack.c.b16 %v740, %v738
    %v763 = vpack.c.b16 %v741, %v739
    %v764 = vpack.c.b16 %v744, %v742
    %v765 = vpack.c.b16 %v745, %v743
    %v766 = vpack.c.b16 %v748, %v746
    %v767 = vpack.c.b16 %v749, %v747
    %v768 = vpack.c.b16 %v752, %v750
    %v769 = vpack.c.b16 %v753, %v751
    %786 = vmatprep.subr.bf16.mxu0 %v755
    %787 = vmatpush1.bf16.msra.mxu0 %v754
    %788 = vmatprep.subr.bf16.mxu0 %v757
    %789 = vmatpush1.bf16.msra.mxu0 %v756
    %790 = vmatprep.subr.bf16.mxu0 %v759
    %791 = vmatpush1.bf16.msra.mxu0 %v758
    %792 = vmatprep.subr.bf16.mxu0 %v761
    %793 = vmatpush1.bf16.msra.mxu0 %v760
    %794 = vmatprep.subr.bf16.mxu0 %v763
    %795 = vmatpush1.bf16.msra.mxu0 %v762
    %796 = vmatprep.subr.bf16.mxu0 %v765
    %797 = vmatpush1.bf16.msra.mxu0 %v764
    %798 = vmatprep.subr.bf16.mxu0 %v767
    %799 = vmatpush1.bf16.msra.mxu0 %v766
    %800 = vmatprep.subr.bf16.mxu0 %v769
    %801 = vmatpush1.bf16.msra.mxu0 %v768
    %802 = vmatprep.subr.bf16.mxu0 0
    %803 = vmatpush1.bf16.msra.mxu0 0
    %804 = vmatprep.subr.bf16.mxu0 0
    %805 = vmatpush1.bf16.msra.mxu0 0
    %806 = vmatprep.subr.bf16.mxu0 0
    %807 = vmatpush1.bf16.msra.mxu0 0
    %808 = vmatprep.subr.bf16.mxu0 0
    %809 = vmatpush1.bf16.msra.mxu0 0
    %810 = vmatprep.subr.bf16.mxu0 0
    %811 = vmatpush1.bf16.msra.mxu0 0
    %812 = vmatprep.subr.bf16.mxu0 0
    %813 = vmatpush1.bf16.msra.mxu0 0
    %814 = vmatprep.subr.bf16.mxu0 0
    %815 = vmatpush1.bf16.msra.mxu0 0
    %816 = vmatprep.subr.bf16.mxu0 0
    %817 = vmatpush1.bf16.msra.mxu0 0
    %818 = vmatprep.mubr.bf16.mxu0 0
    %819 = vmatmul.mubr.bf16.gmra.mrb[0].mxu0 %v698
    %v820 = vpop.f32.mrb[0].mxu0
    %v821 = vadd.f32 0.0, %v820
    %v822 = vpop.f32.mrb[0].mxu0
    %v823 = vadd.f32 0.0, %v822
    %v824 = vpop.f32.mrb[0].mxu0
    %v825 = vadd.f32 0.0, %v824
    %v826 = vpop.f32.mrb[0].mxu0
    %v827 = vadd.f32 0.0, %v826
    %828 = vmatprep.mubr.bf16.mxu0 0
    %829 = vmatmul.mubr.bf16.gmra.mrb[0].mxu0 %v699
    %v830 = vpop.f32.mrb[0].mxu0
    %v831 = vadd.f32 0.0, %v830
    %v832 = vpop.f32.mrb[0].mxu0
    %v833 = vadd.f32 0.0, %v832
    %v834 = vpop.f32.mrb[0].mxu0
    %v835 = vadd.f32 0.0, %v834
    %v836 = vpop.f32.mrb[0].mxu0
    %v837 = vadd.f32 0.0, %v836
    %838 = vmatprep.mubr.bf16.mxu0 0
    %839 = vmatmul.mubr.bf16.gmra.mrb[0].mxu0 %v700
    %v840 = vpop.f32.mrb[0].mxu0
    %v841 = vadd.f32 0.0, %v840
    %v842 = vpop.f32.mrb[0].mxu0
    %v843 = vadd.f32 0.0, %v842
    %v844 = vpop.f32.mrb[0].mxu0
    %v845 = vadd.f32 0.0, %v844
    %v846 = vpop.f32.mrb[0].mxu0
    %v847 = vadd.f32 0.0, %v846
    %848 = vmatprep.mubr.bf16.mxu0 0
    %849 = vmatmul.mubr.bf16.gmra.mrb[0].mxu0 %v701
    %v850 = vpop.f32.mrb[0].mxu0
    %v851 = vadd.f32 0.0, %v850
    %v852 = vpop.f32.mrb[0].mxu0
    %v853 = vadd.f32 0.0, %v852
    %v854 = vpop.f32.mrb[0].mxu0
    %v855 = vadd.f32 0.0, %v854
    %v856 = vpop.f32.mrb[0].mxu0
    %v857 = vadd.f32 0.0, %v856
    %858 = vdwg.mxu0
    %v859 = vadd.f32 %v640, %v821
    %v860 = vadd.f32 %v641, %v823
    %v861 = vadd.f32 %v642, %v825
    %v862 = vadd.f32 %v643, %v827
    %v863 = vadd.f32 %v644, %v831
    %v864 = vadd.f32 %v645, %v833
    %v865 = vadd.f32 %v646, %v835
    %v866 = vadd.f32 %v647, %v837
    %v867 = vadd.f32 %v648, %v841
    %v868 = vadd.f32 %v649, %v843
    %v869 = vadd.f32 %v650, %v845
    %v870 = vadd.f32 %v651, %v847
    %v871 = vadd.f32 %v652, %v851
    %v872 = vadd.f32 %v653, %v853
    %v873 = vadd.f32 %v654, %v855
    %v874 = vadd.f32 %v655, %v857
    %s875 = scalar_lea.vmem %s0, 128
    %v876 = vld [vmem:[%s875] sm:$0xf]
    %v877 = vld [vmem:[%s875 + $0x4] sm:$0xf]
    %v878 = vld [vmem:[%s875 + $0x8] sm:$0xf]
    %v879 = vld [vmem:[%s875 + $0xc] sm:$0xf]
    %v880 = vld [vmem:[%s875 + $0x10] sm:$0xf]
    %v881 = vld [vmem:[%s875 + $0x14] sm:$0xf]
    %v882 = vld [vmem:[%s875 + $0x18] sm:$0xf]
    %v883 = vld [vmem:[%s875 + $0x1c] sm:$0xf]
    %s884 = scalar_lea.vmem %s1, 512
    %v885 = vld [vmem:[%s884] sm:$0xff]
    %v886 = vld [vmem:[%s884 + $0x8] sm:$0xff]
    %v887 = vld [vmem:[%s884 + $0x10] sm:$0xff]
    %v888 = vld [vmem:[%s884 + $0x18] sm:$0xff]
    %v889 = vld [vmem:[%s884 + $0x20] sm:$0xff]
    %v890 = vld [vmem:[%s884 + $0x28] sm:$0xff]
    %v891 = vld [vmem:[%s884 + $0x30] sm:$0xff]
    %v892 = vld [vmem:[%s884 + $0x38] sm:$0xff]
    %v893 = vld [vmem:[%s884 + $0x40] sm:$0xff]
    %v894 = vld [vmem:[%s884 + $0x48] sm:$0xff]
    %v895 = vld [vmem:[%s884 + $0x50] sm:$0xff]
    %v896 = vld [vmem:[%s884 + $0x58] sm:$0xff]
    %v897 = vld [vmem:[%s884 + $0x60] sm:$0xff]
    %v898 = vld [vmem:[%s884 + $0x68] sm:$0xff]
    %v899 = vld [vmem:[%s884 + $0x70] sm:$0xff]
    %v900 = vld [vmem:[%s884 + $0x78] sm:$0xff]
    %v909 = vunpack.c.l.b16 %v876
    %v910 = vunpack.c.l.b16 %v877
    %v911 = vunpack.c.l.b16 %v878
    %v912 = vunpack.c.l.b16 %v879
    %v913 = vunpack.c.l.b16 %v880
    %v914 = vunpack.c.l.b16 %v881
    %v915 = vunpack.c.l.b16 %v882
    %v916 = vunpack.c.l.b16 %v883
    %v917 = vpack.c.b16 %v910, %v909
    %v918 = vpack.c.b16 %v912, %v911
    %v919 = vpack.c.b16 %v914, %v913
    %v920 = vpack.c.b16 %v916, %v915
    %v941 = vunpack.c.l.b16 %v885
    %v942 = vunpack.c.h.b16 %v885
    %v943 = vunpack.c.l.b16 %v886
    %v944 = vunpack.c.h.b16 %v886
    %v945 = vunpack.c.l.b16 %v887
    %v946 = vunpack.c.h.b16 %v887
    %v947 = vunpack.c.l.b16 %v888
    %v948 = vunpack.c.h.b16 %v888
    %v949 = vunpack.c.l.b16 %v889
    %v950 = vunpack.c.h.b16 %v889
    %v951 = vunpack.c.l.b16 %v890
    %v952 = vunpack.c.h.b16 %v890
    %v953 = vunpack.c.l.b16 %v891
    %v954 = vunpack.c.h.b16 %v891
    %v955 = vunpack.c.l.b16 %v892
    %v956 = vunpack.c.h.b16 %v892
    %v957 = vunpack.c.l.b16 %v893
    %v958 = vunpack.c.h.b16 %v893
    %v959 = vunpack.c.l.b16 %v894
    %v960 = vunpack.c.h.b16 %v894
    %v961 = vunpack.c.l.b16 %v895
    %v962 = vunpack.c.h.b16 %v895
    %v963 = vunpack.c.l.b16 %v896
    %v964 = vunpack.c.h.b16 %v896
    %v965 = vunpack.c.l.b16 %v897
    %v966 = vunpack.c.h.b16 %v897
    %v967 = vunpack.c.l.b16 %v898
    %v968 = vunpack.c.h.b16 %v898
    %v969 = vunpack.c.l.b16 %v899
    %v970 = vunpack.c.h.b16 %v899
    %v971 = vunpack.c.l.b16 %v900
    %v972 = vunpack.c.h.b16 %v900
    %v973 = vpack.c.b16 %v943, %v941
    %v974 = vpack.c.b16 %v944, %v942
    %v975 = vpack.c.b16 %v947, %v945
    %v976 = vpack.c.b16 %v948, %v946
    %v977 = vpack.c.b16 %v951, %v949
    %v978 = vpack.c.b16 %v952, %v950
    %v979 = vpack.c.b16 %v955, %v953
    %v980 = vpack.c.b16 %v956, %v954
    %v981 = vpack.c.b16 %v959, %v957
    %v982 = vpack.c.b16 %v960, %v958
    %v983 = vpack.c.b16 %v963, %v961
    %v984 = vpack.c.b16 %v964, %v962
    %v985 = vpack.c.b16 %v967, %v965
    %v986 = vpack.c.b16 %v968, %v966
    %v987 = vpack.c.b16 %v971, %v969
    %v988 = vpack.c.b16 %v972, %v970
    %1005 = vmatprep.subr.bf16.mxu0 %v974
    %1006 = vmatpush1.bf16.msra.mxu0 %v973
    %1007 = vmatprep.subr.bf16.mxu0 %v976
    %1008 = vmatpush1.bf16.msra.mxu0 %v975
    %1009 = vmatprep.subr.bf16.mxu0 %v978
    %1010 = vmatpush1.bf16.msra.mxu0 %v977
    %1011 = vmatprep.subr.bf16.mxu0 %v980
    %1012 = vmatpush1.bf16.msra.mxu0 %v979
    %1013 = vmatprep.subr.bf16.mxu0 %v982
    %1014 = vmatpush1.bf16.msra.mxu0 %v981
    %1015 = vmatprep.subr.bf16.mxu0 %v984
    %1016 = vmatpush1.bf16.msra.mxu0 %v983
    %1017 = vmatprep.subr.bf16.mxu0 %v986
    %1018 = vmatpush1.bf16.msra.mxu0 %v985
    %1019 = vmatprep.subr.bf16.mxu0 %v988
    %1020 = vmatpush1.bf16.msra.mxu0 %v987
    %1021 = vmatprep.subr.bf16.mxu0 0
    %1022 = vmatpush1.bf16.msra.mxu0 0
    %1023 = vmatprep.subr.bf16.mxu0 0
    %1024 = vmatpush1.bf16.msra.mxu0 0
    %1025 = vmatprep.subr.bf16.mxu0 0
    %1026 = vmatpush1.bf16.msra.mxu0 0
    %1027 = vmatprep.subr.bf16.mxu0 0
    %1028 = vmatpush1.bf16.msra.mxu0 0
    %1029 = vmatprep.subr.bf16.mxu0 0
    %1030 = vmatpush1.bf16.msra.mxu0 0
    %1031 = vmatprep.subr.bf16.mxu0 0
    %1032 = vmatpush1.bf16.msra.mxu0 0
    %1033 = vmatprep.subr.bf16.mxu0 0
    %1034 = vmatpush1.bf16.msra.mxu0 0
    %1035 = vmatprep.subr.bf16.mxu0 0
    %1036 = vmatpush1.bf16.msra.mxu0 0
    %1037 = vmatprep.mubr.bf16.mxu0 0
    %1038 = vmatmul.mubr.bf16.gmra.mrb[0].mxu0 %v917
    %v1039 = vpop.f32.mrb[0].mxu0
    %v1040 = vadd.f32 0.0, %v1039
    %v1041 = vpop.f32.mrb[0].mxu0
    %v1042 = vadd.f32 0.0, %v1041
    %v1043 = vpop.f32.mrb[0].mxu0
    %v1044 = vadd.f32 0.0, %v1043
    %v1045 = vpop.f32.mrb[0].mxu0
    %v1046 = vadd.f32 0.0, %v1045
    %1047 = vmatprep.mubr.bf16.mxu0 0
    %1048 = vmatmul.mubr.bf16.gmra.mrb[0].mxu0 %v918
    %v1049 = vpop.f32.mrb[0].mxu0
    %v1050 = vadd.f32 0.0, %v1049
    %v1051 = vpop.f32.mrb[0].mxu0
    %v1052 = vadd.f32 0.0, %v1051
    %v1053 = vpop.f32.mrb[0].mxu0
    %v1054 = vadd.f32 0.0, %v1053
    %v1055 = vpop.f32.mrb[0].mxu0
    %v1056 = vadd.f32 0.0, %v1055
    %1057 = vmatprep.mubr.bf16.mxu0 0
    %1058 = vmatmul.mubr.bf16.gmra.mrb[0].mxu0 %v919
    %v1059 = vpop.f32.mrb[0].mxu0
    %v1060 = vadd.f32 0.0, %v1059
    %v1061 = vpop.f32.mrb[0].mxu0
    %v1062 = vadd.f32 0.0, %v1061
    %v1063 = vpop.f32.mrb[0].mxu0
    %v1064 = vadd.f32 0.0, %v1063
    %v1065 = vpop.f32.mrb[0].mxu0
    %v1066 = vadd.f32 0.0, %v1065
    %1067 = vmatprep.mubr.bf16.mxu0 0
    %1068 = vmatmul.mubr.bf16.gmra.mrb[0].mxu0 %v920
    %v1069 = vpop.f32.mrb[0].mxu0
    %v1070 = vadd.f32 0.0, %v1069
    %v1071 = vpop.f32.mrb[0].mxu0
    %v1072 = vadd.f32 0.0, %v1071
    %v1073 = vpop.f32.mrb[0].mxu0
    %v1074 = vadd.f32 0.0, %v1073
    %v1075 = vpop.f32.mrb[0].mxu0
    %v1076 = vadd.f32 0.0, %v1075
    %1077 = vdwg.mxu0
    %v1078 = vadd.f32 %v859, %v1040
    %v1079 = vadd.f32 %v860, %v1042
    %v1080 = vadd.f32 %v861, %v1044
    %v1081 = vadd.f32 %v862, %v1046
    %v1082 = vadd.f32 %v863, %v1050
    %v1083 = vadd.f32 %v864, %v1052
    %v1084 = vadd.f32 %v865, %v1054
    %v1085 = vadd.f32 %v866, %v1056
    %v1086 = vadd.f32 %v867, %v1060
    %v1087 = vadd.f32 %v868, %v1062
    %v1088 = vadd.f32 %v869, %v1064
    %v1089 = vadd.f32 %v870, %v1066
    %v1090 = vadd.f32 %v871, %v1070
    %v1091 = vadd.f32 %v872, %v1072
    %v1092 = vadd.f32 %v873, %v1074
    %v1093 = vadd.f32 %v874, %v1076
    %v1094 = vmax.f32 %v1078, %v1080
    %v1095 = vmax.f32 %v1079, %v1081
    %v1096 = vmax.f32 %v1082, %v1084
    %v1097 = vmax.f32 %v1083, %v1085
    %v1098 = vmax.f32 %v1086, %v1088
    %v1099 = vmax.f32 %v1087, %v1089
    %v1100 = vmax.f32 %v1090, %v1092
    %v1101 = vmax.f32 %v1091, %v1093
    %v1102 = vld [vmem:[%s3] sm:$0x1]
    %v1103 = vmax.f32 %v1094, %v1095
    %v1104 = vmax.f32 %v1098, %v1099
    %v1105 = vlaneseq
    %v1106 = vshrl.u32 %v1105, 7
    %v1107 = vsub.s32 0, %v1106
    %v1108 = vrot.slane %v1102, %v1107
    %v1109 = vadd.f32 %v1103, %v1108
    %v1110 = vadd.f32 %v1104, %v1108
    %v1111 = vmax.f32 %v1109, 0.0
    %v1112 = vmax.f32 %v1110, 0.0
    %v1113 = vmax.f32 %v1096, %v1097
    %v1114 = vmax.f32 %v1100, %v1101
    %v1115 = vadd.f32 %v1113, %v1108
    %v1116 = vadd.f32 %v1114, %v1108
    %v1117 = vmax.f32 %v1115, 0.0
    %v1118 = vmax.f32 %v1116, 0.0
    %1119 = vst [vmem:[#allocation2] sm:$0xff] %v1111
    %1120 = vst [vmem:[#allocation2 + $0x8] sm:$0xff] %v1112
    %1121 = vst [vmem:[#allocation2 + $0x10] sm:$0xff] %v1117
    %1122 = vst [vmem:[#allocation2 + $0x18] sm:$0xff] %v1118
    %1123 = vst [vmem:[#allocation2 + $0x20] sm:$0xff] 0.0
    %v1124 = vld [vmem:[#allocation2] sm:$0xff]
    %v1125 = vld [vmem:[#allocation2 + $0x8] sm:$0xff]
    %v1126 = vld [vmem:[#allocation2 + $0x10] sm:$0xff]
    %v1127 = vld [vmem:[#allocation2 + $0x18] sm:$0xff]
    %v1128 = vpack.c.bf16 %v1125, %v1124
    %v1129 = vpack.c.bf16 %v1127, %v1126
    %s1130 = scalar_lea.vmem %s1, 640
    %v1131 = vld [vmem:[%s1130] sm:$0xff]
    %v1132 = vld [vmem:[%s1130 + $0x8] sm:$0xff]
    %v1133 = vld [vmem:[%s1130 + $0x10] sm:$0xff]
    %v1134 = vld [vmem:[%s1130 + $0x18] sm:$0xff]
    %v1135 = vld [vmem:[%s1130 + $0x20] sm:$0xff]
    %v1136 = vld [vmem:[%s1130 + $0x28] sm:$0xff]
    %v1137 = vld [vmem:[%s1130 + $0x30] sm:$0xff]
    %v1138 = vld [vmem:[%s1130 + $0x38] sm:$0xff]
    %v1139 = vld [vmem:[%s1130 + $0x40] sm:$0xff]
    %v1140 = vld [vmem:[%s1130 + $0x48] sm:$0xff]
    %v1141 = vld [vmem:[%s1130 + $0x50] sm:$0xff]
    %v1142 = vld [vmem:[%s1130 + $0x58] sm:$0xff]
    %v1143 = vld [vmem:[%s1130 + $0x60] sm:$0xff]
    %v1144 = vld [vmem:[%s1130 + $0x68] sm:$0xff]
    %v1145 = vld [vmem:[%s1130 + $0x70] sm:$0xff]
    %v1146 = vld [vmem:[%s1130 + $0x78] sm:$0xff]
    %v1147 = vld [vmem:[#allocation2 + $0x1] sm:$0xff]
    %v1148 = vld [vmem:[#allocation2 + $0x9] sm:$0xff]
    %v1149 = vpack.c.bf16 %v1148, %v1147
    %s1150 = scalar_lea.vmem %s1, 768
    %v1151 = vld [vmem:[%s1150] sm:$0xff]
    %v1152 = vld [vmem:[%s1150 + $0x8] sm:$0xff]
    %v1153 = vld [vmem:[%s1150 + $0x10] sm:$0xff]
    %v1154 = vld [vmem:[%s1150 + $0x18] sm:$0xff]
    %v1155 = vld [vmem:[%s1150 + $0x20] sm:$0xff]
    %v1156 = vld [vmem:[%s1150 + $0x28] sm:$0xff]
    %v1157 = vld [vmem:[%s1150 + $0x30] sm:$0xff]
    %v1158 = vld [vmem:[%s1150 + $0x38] sm:$0xff]
    %v1159 = vld [vmem:[%s1150 + $0x40] sm:$0xff]
    %v1160 = vld [vmem:[%s1150 + $0x48] sm:$0xff]
    %v1161 = vld [vmem:[%s1150 + $0x50] sm:$0xff]
    %v1162 = vld [vmem:[%s1150 + $0x58] sm:$0xff]
    %v1163 = vld [vmem:[%s1150 + $0x60] sm:$0xff]
    %v1164 = vld [vmem:[%s1150 + $0x68] sm:$0xff]
    %v1165 = vld [vmem:[%s1150 + $0x70] sm:$0xff]
    %v1166 = vld [vmem:[%s1150 + $0x78] sm:$0xff]
    %v1183 = vunpack.c.l.b16 %v1151
    %v1184 = vunpack.c.h.b16 %v1151
    %v1185 = vunpack.c.l.b16 %v1152
    %v1186 = vunpack.c.h.b16 %v1152
    %v1187 = vunpack.c.l.b16 %v1153
    %v1188 = vunpack.c.h.b16 %v1153
    %v1189 = vunpack.c.l.b16 %v1154
    %v1190 = vunpack.c.h.b16 %v1154
    %v1191 = vunpack.c.l.b16 %v1155
    %v1192 = vunpack.c.h.b16 %v1155
    %v1193 = vunpack.c.l.b16 %v1156
    %v1194 = vunpack.c.h.b16 %v1156
    %v1195 = vunpack.c.l.b16 %v1157
    %v1196 = vunpack.c.h.b16 %v1157
    %v1197 = vunpack.c.l.b16 %v1158
    %v1198 = vunpack.c.h.b16 %v1158
    %v1199 = vunpack.c.l.b16 %v1159
    %v1200 = vunpack.c.h.b16 %v1159
    %v1201 = vunpack.c.l.b16 %v1160
    %v1202 = vunpack.c.h.b16 %v1160
    %v1203 = vunpack.c.l.b16 %v1161
    %v1204 = vunpack.c.h.b16 %v1161
    %v1205 = vunpack.c.l.b16 %v1162
    %v1206 = vunpack.c.h.b16 %v1162
    %v1207 = vunpack.c.l.b16 %v1163
    %v1208 = vunpack.c.h.b16 %v1163
    %v1209 = vunpack.c.l.b16 %v1164
    %v1210 = vunpack.c.h.b16 %v1164
    %v1211 = vunpack.c.l.b16 %v1165
    %v1212 = vunpack.c.h.b16 %v1165
    %v1213 = vunpack.c.l.b16 %v1166
    %v1214 = vunpack.c.h.b16 %v1166
    %v1215 = vpack.c.b16 %v1185, %v1183
    %v1216 = vpack.c.b16 %v1186, %v1184
    %v1217 = vpack.c.b16 %v1189, %v1187
    %v1218 = vpack.c.b16 %v1190, %v1188
    %v1219 = vpack.c.b16 %v1193, %v1191
    %v1220 = vpack.c.b16 %v1194, %v1192
    %v1221 = vpack.c.b16 %v1197, %v1195
    %v1222 = vpack.c.b16 %v1198, %v1196
    %v1223 = vpack.c.b16 %v1201, %v1199
    %v1224 = vpack.c.b16 %v1202, %v1200
    %v1225 = vpack.c.b16 %v1205, %v1203
    %v1226 = vpack.c.b16 %v1206, %v1204
    %v1227 = vpack.c.b16 %v1209, %v1207
    %v1228 = vpack.c.b16 %v1210, %v1208
    %v1229 = vpack.c.b16 %v1213, %v1211
    %v1230 = vpack.c.b16 %v1214, %v1212
    %1247 = vmatprep.subr.bf16.mxu0 %v1216
    %1248 = vmatpush1.bf16.msra.mxu0 %v1215
    %1249 = vmatprep.subr.bf16.mxu0 %v1218
    %1250 = vmatpush1.bf16.msra.mxu0 %v1217
    %1251 = vmatprep.subr.bf16.mxu0 %v1220
    %1252 = vmatpush1.bf16.msra.mxu0 %v1219
    %1253 = vmatprep.subr.bf16.mxu0 %v1222
    %1254 = vmatpush1.bf16.msra.mxu0 %v1221
    %1255 = vmatprep.subr.bf16.mxu0 %v1224
    %1256 = vmatpush1.bf16.msra.mxu0 %v1223
    %1257 = vmatprep.subr.bf16.mxu0 %v1226
    %1258 = vmatpush1.bf16.msra.mxu0 %v1225
    %1259 = vmatprep.subr.bf16.mxu0 %v1228
    %1260 = vmatpush1.bf16.msra.mxu0 %v1227
    %1261 = vmatprep.subr.bf16.mxu0 %v1230
    %1262 = vmatpush1.bf16.msra.mxu0 %v1229
    %1263 = vmatprep.subr.bf16.mxu0 0
    %1264 = vmatpush1.bf16.msra.mxu0 0
    %1265 = vmatprep.subr.bf16.mxu0 0
    %1266 = vmatpush1.bf16.msra.mxu0 0
    %1267 = vmatprep.subr.bf16.mxu0 0
    %1268 = vmatpush1.bf16.msra.mxu0 0
    %1269 = vmatprep.subr.bf16.mxu0 0
    %1270 = vmatpush1.bf16.msra.mxu0 0
    %1271 = vmatprep.subr.bf16.mxu0 0
    %1272 = vmatpush1.bf16.msra.mxu0 0
    %1273 = vmatprep.subr.bf16.mxu0 0
    %1274 = vmatpush1.bf16.msra.mxu0 0
    %1275 = vmatprep.subr.bf16.mxu0 0
    %1276 = vmatpush1.bf16.msra.mxu0 0
    %1277 = vmatprep.subr.bf16.mxu0 0
    %1278 = vmatpush1.bf16.msra.mxu0 0
    %1279 = vmatprep.mubr.bf16.mxu0 0
    %1280 = vmatmul.mubr.bf16.gmra.mrb[0].mxu0 %v1129
    %v1281 = vpop.f32.mrb[0].mxu0
    %v1282 = vadd.f32 0.0, %v1281
    %v1283 = vpop.f32.mrb[0].mxu0
    %v1284 = vadd.f32 0.0, %v1283
    %v1285 = vpop.f32.mrb[0].mxu0
    %v1286 = vadd.f32 0.0, %v1285
    %v1287 = vpop.f32.mrb[0].mxu0
    %v1288 = vadd.f32 0.0, %v1287
    %1289 = vmatprep.mubr.bf16.mxu0 0
    %1290 = vmatmul.mubr.bf16.gmra.mrb[0].mxu0 %v1149
    %v1291 = vpop.f32.mrb[0].mxu0
    %v1292 = vadd.f32 0.0, %v1291
    %v1293 = vpop.f32.mrb[0].mxu0
    %v1294 = vadd.f32 0.0, %v1293
    %v1295 = vpop.f32.mrb[0].mxu0
    %v1296 = vadd.f32 0.0, %v1295
    %v1297 = vpop.f32.mrb[0].mxu0
    %v1298 = vadd.f32 0.0, %v1297
    %1299 = vdwg.mxu0
    %v1316 = vunpack.c.l.b16 %v1131
    %v1317 = vunpack.c.h.b16 %v1131
    %v1318 = vunpack.c.l.b16 %v1132
    %v1319 = vunpack.c.h.b16 %v1132
    %v1320 = vunpack.c.l.b16 %v1133
    %v1321 = vunpack.c.h.b16 %v1133
    %v1322 = vunpack.c.l.b16 %v1134
    %v1323 = vunpack.c.h.b16 %v1134
    %v1324 = vunpack.c.l.b16 %v1135
    %v1325 = vunpack.c.h.b16 %v1135
    %v1326 = vunpack.c.l.b16 %v1136
    %v1327 = vunpack.c.h.b16 %v1136
    %v1328 = vunpack.c.l.b16 %v1137
    %v1329 = vunpack.c.h.b16 %v1137
    %v1330 = vunpack.c.l.b16 %v1138
    %v1331 = vunpack.c.h.b16 %v1138
    %v1332 = vunpack.c.l.b16 %v1139
    %v1333 = vunpack.c.h.b16 %v1139
    %v1334 = vunpack.c.l.b16 %v1140
    %v1335 = vunpack.c.h.b16 %v1140
    %v1336 = vunpack.c.l.b16 %v1141
    %v1337 = vunpack.c.h.b16 %v1141
    %v1338 = vunpack.c.l.b16 %v1142
    %v1339 = vunpack.c.h.b16 %v1142
    %v1340 = vunpack.c.l.b16 %v1143
    %v1341 = vunpack.c.h.b16 %v1143
    %v1342 = vunpack.c.l.b16 %v1144
    %v1343 = vunpack.c.h.b16 %v1144
    %v1344 = vunpack.c.l.b16 %v1145
    %v1345 = vunpack.c.h.b16 %v1145
    %v1346 = vunpack.c.l.b16 %v1146
    %v1347 = vunpack.c.h.b16 %v1146
    %v1348 = vpack.c.b16 %v1318, %v1316
    %v1349 = vpack.c.b16 %v1319, %v1317
    %v1350 = vpack.c.b16 %v1322, %v1320
    %v1351 = vpack.c.b16 %v1323, %v1321
    %v1352 = vpack.c.b16 %v1326, %v1324
    %v1353 = vpack.c.b16 %v1327, %v1325
    %v1354 = vpack.c.b16 %v1330, %v1328
    %v1355 = vpack.c.b16 %v1331, %v1329
    %v1356 = vpack.c.b16 %v1334, %v1332
    %v1357 = vpack.c.b16 %v1335, %v1333
    %v1358 = vpack.c.b16 %v1338, %v1336
    %v1359 = vpack.c.b16 %v1339, %v1337
    %v1360 = vpack.c.b16 %v1342, %v1340
    %v1361 = vpack.c.b16 %v1343, %v1341
    %v1362 = vpack.c.b16 %v1346, %v1344
    %v1363 = vpack.c.b16 %v1347, %v1345
    %1380 = vmatprep.subr.bf16.mxu0 %v1349
    %1381 = vmatpush1.bf16.msra.mxu0 %v1348
    %1382 = vmatprep.subr.bf16.mxu0 %v1351
    %1383 = vmatpush1.bf16.msra.mxu0 %v1350
    %1384 = vmatprep.subr.bf16.mxu0 %v1353
    %1385 = vmatpush1.bf16.msra.mxu0 %v1352
    %1386 = vmatprep.subr.bf16.mxu0 %v1355
    %1387 = vmatpush1.bf16.msra.mxu0 %v1354
    %1388 = vmatprep.subr.bf16.mxu0 %v1357
    %1389 = vmatpush1.bf16.msra.mxu0 %v1356
    %1390 = vmatprep.subr.bf16.mxu0 %v1359
    %1391 = vmatpush1.bf16.msra.mxu0 %v1358
    %1392 = vmatprep.subr.bf16.mxu0 %v1361
    %1393 = vmatpush1.bf16.msra.mxu0 %v1360
    %1394 = vmatprep.subr.bf16.mxu0 %v1363
    %1395 = vmatpush1.bf16.msra.mxu0 %v1362
    %1396 = vmatprep.subr.bf16.mxu0 0
    %1397 = vmatpush1.bf16.msra.mxu0 0
    %1398 = vmatprep.subr.bf16.mxu0 0
    %1399 = vmatpush1.bf16.msra.mxu0 0
    %1400 = vmatprep.subr.bf16.mxu0 0
    %1401 = vmatpush1.bf16.msra.mxu0 0
    %1402 = vmatprep.subr.bf16.mxu0 0
    %1403 = vmatpush1.bf16.msra.mxu0 0
    %1404 = vmatprep.subr.bf16.mxu0 0
    %1405 = vmatpush1.bf16.msra.mxu0 0
    %1406 = vmatprep.subr.bf16.mxu0 0
    %1407 = vmatpush1.bf16.msra.mxu0 0
    %1408 = vmatprep.subr.bf16.mxu0 0
    %1409 = vmatpush1.bf16.msra.mxu0 0
    %1410 = vmatprep.subr.bf16.mxu0 0
    %1411 = vmatpush1.bf16.msra.mxu0 0
    %1412 = vmatprep.mubr.bf16.mxu0 0
    %1413 = vmatmul.mubr.bf16.gmra.mrb[0].mxu0 %v1128
    %v1414 = vpop.f32.mrb[0].mxu0
    %v1415 = vadd.f32 %v1282, %v1414
    %v1416 = vpop.f32.mrb[0].mxu0
    %v1417 = vadd.f32 %v1284, %v1416
    %v1418 = vpop.f32.mrb[0].mxu0
    %v1419 = vadd.f32 %v1286, %v1418
    %v1420 = vpop.f32.mrb[0].mxu0
    %v1421 = vadd.f32 %v1288, %v1420
    %1422 = vmatprep.mubr.bf16.mxu0 0
    %1423 = vmatmul.mubr.bf16.gmra.mrb[0].mxu0 %v1129
    %v1424 = vpop.f32.mrb[0].mxu0
    %v1425 = vadd.f32 %v1292, %v1424
    %v1426 = vpop.f32.mrb[0].mxu0
    %v1427 = vadd.f32 %v1294, %v1426
    %v1428 = vpop.f32.mrb[0].mxu0
    %v1429 = vadd.f32 %v1296, %v1428
    %v1430 = vpop.f32.mrb[0].mxu0
    %v1431 = vadd.f32 %v1298, %v1430
    %1432 = vdwg.mxu0
    %v1433 = vld [vmem:[#allocation2 + $0x11] sm:$0xff]
    %v1434 = vld [vmem:[#allocation2 + $0x19] sm:$0xff]
    %v1435 = vpack.c.bf16 %v1434, %v1433
    %s1436 = scalar_lea.vmem %s1, 896
    %v1437 = vld [vmem:[%s1436] sm:$0xff]
    %v1438 = vld [vmem:[%s1436 + $0x8] sm:$0xff]
    %v1439 = vld [vmem:[%s1436 + $0x10] sm:$0xff]
    %v1440 = vld [vmem:[%s1436 + $0x18] sm:$0xff]
    %v1441 = vld [vmem:[%s1436 + $0x20] sm:$0xff]
    %v1442 = vld [vmem:[%s1436 + $0x28] sm:$0xff]
    %v1443 = vld [vmem:[%s1436 + $0x30] sm:$0xff]
    %v1444 = vld [vmem:[%s1436 + $0x38] sm:$0xff]
    %v1445 = vld [vmem:[%s1436 + $0x40] sm:$0xff]
    %v1446 = vld [vmem:[%s1436 + $0x48] sm:$0xff]
    %v1447 = vld [vmem:[%s1436 + $0x50] sm:$0xff]
    %v1448 = vld [vmem:[%s1436 + $0x58] sm:$0xff]
    %v1449 = vld [vmem:[%s1436 + $0x60] sm:$0xff]
    %v1450 = vld [vmem:[%s1436 + $0x68] sm:$0xff]
    %v1451 = vld [vmem:[%s1436 + $0x70] sm:$0xff]
    %v1452 = vld [vmem:[%s1436 + $0x78] sm:$0xff]
    %v1469 = vunpack.c.l.b16 %v1437
    %v1470 = vunpack.c.h.b16 %v1437
    %v1471 = vunpack.c.l.b16 %v1438
    %v1472 = vunpack.c.h.b16 %v1438
    %v1473 = vunpack.c.l.b16 %v1439
    %v1474 = vunpack.c.h.b16 %v1439
    %v1475 = vunpack.c.l.b16 %v1440
    %v1476 = vunpack.c.h.b16 %v1440
    %v1477 = vunpack.c.l.b16 %v1441
    %v1478 = vunpack.c.h.b16 %v1441
    %v1479 = vunpack.c.l.b16 %v1442
    %v1480 = vunpack.c.h.b16 %v1442
    %v1481 = vunpack.c.l.b16 %v1443
    %v1482 = vunpack.c.h.b16 %v1443
    %v1483 = vunpack.c.l.b16 %v1444
    %v1484 = vunpack.c.h.b16 %v1444
    %v1485 = vunpack.c.l.b16 %v1445
    %v1486 = vunpack.c.h.b16 %v1445
    %v1487 = vunpack.c.l.b16 %v1446
    %v1488 = vunpack.c.h.b16 %v1446
    %v1489 = vunpack.c.l.b16 %v1447
    %v1490 = vunpack.c.h.b16 %v1447
    %v1491 = vunpack.c.l.b16 %v1448
    %v1492 = vunpack.c.h.b16 %v1448
    %v1493 = vunpack.c.l.b16 %v1449
    %v1494 = vunpack.c.h.b16 %v1449
    %v1495 = vunpack.c.l.b16 %v1450
    %v1496 = vunpack.c.h.b16 %v1450
    %v1497 = vunpack.c.l.b16 %v1451
    %v1498 = vunpack.c.h.b16 %v1451
    %v1499 = vunpack.c.l.b16 %v1452
    %v1500 = vunpack.c.h.b16 %v1452
    %v1501 = vpack.c.b16 %v1471, %v1469
    %v1502 = vpack.c.b16 %v1472, %v1470
    %v1503 = vpack.c.b16 %v1475, %v1473
    %v1504 = vpack.c.b16 %v1476, %v1474
    %v1505 = vpack.c.b16 %v1479, %v1477
    %v1506 = vpack.c.b16 %v1480, %v1478
    %v1507 = vpack.c.b16 %v1483, %v1481
    %v1508 = vpack.c.b16 %v1484, %v1482
    %v1509 = vpack.c.b16 %v1487, %v1485
    %v1510 = vpack.c.b16 %v1488, %v1486
    %v1511 = vpack.c.b16 %v1491, %v1489
    %v1512 = vpack.c.b16 %v1492, %v1490
    %v1513 = vpack.c.b16 %v1495, %v1493
    %v1514 = vpack.c.b16 %v1496, %v1494
    %v1515 = vpack.c.b16 %v1499, %v1497
    %v1516 = vpack.c.b16 %v1500, %v1498
    %1533 = vmatprep.subr.bf16.mxu0 %v1502
    %1534 = vmatpush1.bf16.msra.mxu0 %v1501
    %1535 = vmatprep.subr.bf16.mxu0 %v1504
    %1536 = vmatpush1.bf16.msra.mxu0 %v1503
    %1537 = vmatprep.subr.bf16.mxu0 %v1506
    %1538 = vmatpush1.bf16.msra.mxu0 %v1505
    %1539 = vmatprep.subr.bf16.mxu0 %v1508
    %1540 = vmatpush1.bf16.msra.mxu0 %v1507
    %1541 = vmatprep.subr.bf16.mxu0 %v1510
    %1542 = vmatpush1.bf16.msra.mxu0 %v1509
    %1543 = vmatprep.subr.bf16.mxu0 %v1512
    %1544 = vmatpush1.bf16.msra.mxu0 %v1511
    %1545 = vmatprep.subr.bf16.mxu0 %v1514
    %1546 = vmatpush1.bf16.msra.mxu0 %v1513
    %1547 = vmatprep.subr.bf16.mxu0 %v1516
    %1548 = vmatpush1.bf16.msra.mxu0 %v1515
    %1549 = vmatprep.subr.bf16.mxu0 0
    %1550 = vmatpush1.bf16.msra.mxu0 0
    %1551 = vmatprep.subr.bf16.mxu0 0
    %1552 = vmatpush1.bf16.msra.mxu0 0
    %1553 = vmatprep.subr.bf16.mxu0 0
    %1554 = vmatpush1.bf16.msra.mxu0 0
    %1555 = vmatprep.subr.bf16.mxu0 0
    %1556 = vmatpush1.bf16.msra.mxu0 0
    %1557 = vmatprep.subr.bf16.mxu0 0
    %1558 = vmatpush1.bf16.msra.mxu0 0
    %1559 = vmatprep.subr.bf16.mxu0 0
    %1560 = vmatpush1.bf16.msra.mxu0 0
    %1561 = vmatprep.subr.bf16.mxu0 0
    %1562 = vmatpush1.bf16.msra.mxu0 0
    %1563 = vmatprep.subr.bf16.mxu0 0
    %1564 = vmatpush1.bf16.msra.mxu0 0
    %1565 = vmatprep.mubr.bf16.mxu0 0
    %1566 = vmatmul.mubr.bf16.gmra.mrb[0].mxu0 %v1149
    %v1567 = vpop.f32.mrb[0].mxu0
    %v1568 = vadd.f32 0.0, %v1567
    %v1569 = vpop.f32.mrb[0].mxu0
    %v1570 = vadd.f32 0.0, %v1569
    %v1571 = vpop.f32.mrb[0].mxu0
    %v1572 = vadd.f32 0.0, %v1571
    %v1573 = vpop.f32.mrb[0].mxu0
    %v1574 = vadd.f32 0.0, %v1573
    %1575 = vmatprep.mubr.bf16.mxu0 0
    %1576 = vmatmul.mubr.bf16.gmra.mrb[0].mxu0 %v1435
    %v1577 = vpop.f32.mrb[0].mxu0
    %v1578 = vadd.f32 0.0, %v1577
    %v1579 = vpop.f32.mrb[0].mxu0
    %v1580 = vadd.f32 0.0, %v1579
    %v1581 = vpop.f32.mrb[0].mxu0
    %v1582 = vadd.f32 0.0, %v1581
    %v1583 = vpop.f32.mrb[0].mxu0
    %v1584 = vadd.f32 0.0, %v1583
    %1585 = vdwg.mxu0
    %v1586 = vadd.f32 %v1415, %v1568
    %v1587 = vadd.f32 %v1417, %v1570
    %v1588 = vadd.f32 %v1419, %v1572
    %v1589 = vadd.f32 %v1421, %v1574
    %v1590 = vadd.f32 %v1425, %v1578
    %v1591 = vadd.f32 %v1427, %v1580
    %v1592 = vadd.f32 %v1429, %v1582
    %v1593 = vadd.f32 %v1431, %v1584
    %v1594 = vld [vmem:[#allocation2 + $0x2] sm:$0xff]
    %v1595 = vld [vmem:[#allocation2 + $0xa] sm:$0xff]
    %v1596 = vpack.c.bf16 %v1595, %v1594
    %s1597 = scalar_lea.vmem %s1, 1024
    %v1598 = vld [vmem:[%s1597] sm:$0xff]
    %v1599 = vld [vmem:[%s1597 + $0x8] sm:$0xff]
    %v1600 = vld [vmem:[%s1597 + $0x10] sm:$0xff]
    %v1601 = vld [vmem:[%s1597 + $0x18] sm:$0xff]
    %v1602 = vld [vmem:[%s1597 + $0x20] sm:$0xff]
    %v1603 = vld [vmem:[%s1597 + $0x28] sm:$0xff]
    %v1604 = vld [vmem:[%s1597 + $0x30] sm:$0xff]
    %v1605 = vld [vmem:[%s1597 + $0x38] sm:$0xff]
    %v1606 = vld [vmem:[%s1597 + $0x40] sm:$0xff]
    %v1607 = vld [vmem:[%s1597 + $0x48] sm:$0xff]
    %v1608 = vld [vmem:[%s1597 + $0x50] sm:$0xff]
    %v1609 = vld [vmem:[%s1597 + $0x58] sm:$0xff]
    %v1610 = vld [vmem:[%s1597 + $0x60] sm:$0xff]
    %v1611 = vld [vmem:[%s1597 + $0x68] sm:$0xff]
    %v1612 = vld [vmem:[%s1597 + $0x70] sm:$0xff]
    %v1613 = vld [vmem:[%s1597 + $0x78] sm:$0xff]
    %v1630 = vunpack.c.l.b16 %v1598
    %v1631 = vunpack.c.h.b16 %v1598
    %v1632 = vunpack.c.l.b16 %v1599
    %v1633 = vunpack.c.h.b16 %v1599
    %v1634 = vunpack.c.l.b16 %v1600
    %v1635 = vunpack.c.h.b16 %v1600
    %v1636 = vunpack.c.l.b16 %v1601
    %v1637 = vunpack.c.h.b16 %v1601
    %v1638 = vunpack.c.l.b16 %v1602
    %v1639 = vunpack.c.h.b16 %v1602
    %v1640 = vunpack.c.l.b16 %v1603
    %v1641 = vunpack.c.h.b16 %v1603
    %v1642 = vunpack.c.l.b16 %v1604
    %v1643 = vunpack.c.h.b16 %v1604
    %v1644 = vunpack.c.l.b16 %v1605
    %v1645 = vunpack.c.h.b16 %v1605
    %v1646 = vunpack.c.l.b16 %v1606
    %v1647 = vunpack.c.h.b16 %v1606
    %v1648 = vunpack.c.l.b16 %v1607
    %v1649 = vunpack.c.h.b16 %v1607
    %v1650 = vunpack.c.l.b16 %v1608
    %v1651 = vunpack.c.h.b16 %v1608
    %v1652 = vunpack.c.l.b16 %v1609
    %v1653 = vunpack.c.h.b16 %v1609
    %v1654 = vunpack.c.l.b16 %v1610
    %v1655 = vunpack.c.h.b16 %v1610
    %v1656 = vunpack.c.l.b16 %v1611
    %v1657 = vunpack.c.h.b16 %v1611
    %v1658 = vunpack.c.l.b16 %v1612
    %v1659 = vunpack.c.h.b16 %v1612
    %v1660 = vunpack.c.l.b16 %v1613
    %v1661 = vunpack.c.h.b16 %v1613
    %v1662 = vpack.c.b16 %v1632, %v1630
    %v1663 = vpack.c.b16 %v1633, %v1631
    %v1664 = vpack.c.b16 %v1636, %v1634
    %v1665 = vpack.c.b16 %v1637, %v1635
    %v1666 = vpack.c.b16 %v1640, %v1638
    %v1667 = vpack.c.b16 %v1641, %v1639
    %v1668 = vpack.c.b16 %v1644, %v1642
    %v1669 = vpack.c.b16 %v1645, %v1643
    %v1670 = vpack.c.b16 %v1648, %v1646
    %v1671 = vpack.c.b16 %v1649, %v1647
    %v1672 = vpack.c.b16 %v1652, %v1650
    %v1673 = vpack.c.b16 %v1653, %v1651
    %v1674 = vpack.c.b16 %v1656, %v1654
    %v1675 = vpack.c.b16 %v1657, %v1655
    %v1676 = vpack.c.b16 %v1660, %v1658
    %v1677 = vpack.c.b16 %v1661, %v1659
    %1694 = vmatprep.subr.bf16.mxu0 %v1663
    %1695 = vmatpush1.bf16.msra.mxu0 %v1662
    %1696 = vmatprep.subr.bf16.mxu0 %v1665
    %1697 = vmatpush1.bf16.msra.mxu0 %v1664
    %1698 = vmatprep.subr.bf16.mxu0 %v1667
    %1699 = vmatpush1.bf16.msra.mxu0 %v1666
    %1700 = vmatprep.subr.bf16.mxu0 %v1669
    %1701 = vmatpush1.bf16.msra.mxu0 %v1668
    %1702 = vmatprep.subr.bf16.mxu0 %v1671
    %1703 = vmatpush1.bf16.msra.mxu0 %v1670
    %1704 = vmatprep.subr.bf16.mxu0 %v1673
    %1705 = vmatpush1.bf16.msra.mxu0 %v1672
    %1706 = vmatprep.subr.bf16.mxu0 %v1675
    %1707 = vmatpush1.bf16.msra.mxu0 %v1674
    %1708 = vmatprep.subr.bf16.mxu0 %v1677
    %1709 = vmatpush1.bf16.msra.mxu0 %v1676
    %1710 = vmatprep.subr.bf16.mxu0 0
    %1711 = vmatpush1.bf16.msra.mxu0 0
    %1712 = vmatprep.subr.bf16.mxu0 0
    %1713 = vmatpush1.bf16.msra.mxu0 0
    %1714 = vmatprep.subr.bf16.mxu0 0
    %1715 = vmatpush1.bf16.msra.mxu0 0
    %1716 = vmatprep.subr.bf16.mxu0 0
    %1717 = vmatpush1.bf16.msra.mxu0 0
    %1718 = vmatprep.subr.bf16.mxu0 0
    %1719 = vmatpush1.bf16.msra.mxu0 0
    %1720 = vmatprep.subr.bf16.mxu0 0
    %1721 = vmatpush1.bf16.msra.mxu0 0
    %1722 = vmatprep.subr.bf16.mxu0 0
    %1723 = vmatpush1.bf16.msra.mxu0 0
    %1724 = vmatprep.subr.bf16.mxu0 0
    %1725 = vmatpush1.bf16.msra.mxu0 0
    %1726 = vmatprep.mubr.bf16.mxu0 0
    %1727 = vmatmul.mubr.bf16.gmra.mrb[0].mxu0 %v1435
    %v1728 = vpop.f32.mrb[0].mxu0
    %v1729 = vadd.f32 0.0, %v1728
    %v1730 = vpop.f32.mrb[0].mxu0
    %v1731 = vadd.f32 0.0, %v1730
    %v1732 = vpop.f32.mrb[0].mxu0
    %v1733 = vadd.f32 0.0, %v1732
    %v1734 = vpop.f32.mrb[0].mxu0
    %v1735 = vadd.f32 0.0, %v1734
    %1736 = vmatprep.mubr.bf16.mxu0 0
    %1737 = vmatmul.mubr.bf16.gmra.mrb[0].mxu0 %v1596
    %v1738 = vpop.f32.mrb[0].mxu0
    %v1739 = vadd.f32 0.0, %v1738
    %v1740 = vpop.f32.mrb[0].mxu0
    %v1741 = vadd.f32 0.0, %v1740
    %v1742 = vpop.f32.mrb[0].mxu0
    %v1743 = vadd.f32 0.0, %v1742
    %v1744 = vpop.f32.mrb[0].mxu0
    %v1745 = vadd.f32 0.0, %v1744
    %1746 = vdwg.mxu0
    %v1747 = vadd.f32 %v1586, %v1729
    %v1748 = vadd.f32 %v1587, %v1731
    %v1749 = vadd.f32 %v1588, %v1733
    %v1750 = vadd.f32 %v1589, %v1735
    %v1751 = vadd.f32 %v1590, %v1739
    %v1752 = vadd.f32 %v1591, %v1741
    %v1753 = vadd.f32 %v1592, %v1743
    %v1754 = vadd.f32 %v1593, %v1745
    %v1755 = vld [vmem:[#allocation2 + $0x12] sm:$0xff]
    %v1756 = vld [vmem:[#allocation2 + $0x1a] sm:$0xff]
    %v1757 = vpack.c.bf16 %v1756, %v1755
    %s1758 = scalar_lea.vmem %s1, 1152
    %v1759 = vld [vmem:[%s1758] sm:$0xff]
    %v1760 = vld [vmem:[%s1758 + $0x8] sm:$0xff]
    %v1761 = vld [vmem:[%s1758 + $0x10] sm:$0xff]
    %v1762 = vld [vmem:[%s1758 + $0x18] sm:$0xff]
    %v1763 = vld [vmem:[%s1758 + $0x20] sm:$0xff]
    %v1764 = vld [vmem:[%s1758 + $0x28] sm:$0xff]
    %v1765 = vld [vmem:[%s1758 + $0x30] sm:$0xff]
    %v1766 = vld [vmem:[%s1758 + $0x38] sm:$0xff]
    %v1767 = vld [vmem:[%s1758 + $0x40] sm:$0xff]
    %v1768 = vld [vmem:[%s1758 + $0x48] sm:$0xff]
    %v1769 = vld [vmem:[%s1758 + $0x50] sm:$0xff]
    %v1770 = vld [vmem:[%s1758 + $0x58] sm:$0xff]
    %v1771 = vld [vmem:[%s1758 + $0x60] sm:$0xff]
    %v1772 = vld [vmem:[%s1758 + $0x68] sm:$0xff]
    %v1773 = vld [vmem:[%s1758 + $0x70] sm:$0xff]
    %v1774 = vld [vmem:[%s1758 + $0x78] sm:$0xff]
    %v1791 = vunpack.c.l.b16 %v1759
    %v1792 = vunpack.c.h.b16 %v1759
    %v1793 = vunpack.c.l.b16 %v1760
    %v1794 = vunpack.c.h.b16 %v1760
    %v1795 = vunpack.c.l.b16 %v1761
    %v1796 = vunpack.c.h.b16 %v1761
    %v1797 = vunpack.c.l.b16 %v1762
    %v1798 = vunpack.c.h.b16 %v1762
    %v1799 = vunpack.c.l.b16 %v1763
    %v1800 = vunpack.c.h.b16 %v1763
    %v1801 = vunpack.c.l.b16 %v1764
    %v1802 = vunpack.c.h.b16 %v1764
    %v1803 = vunpack.c.l.b16 %v1765
    %v1804 = vunpack.c.h.b16 %v1765
    %v1805 = vunpack.c.l.b16 %v1766
    %v1806 = vunpack.c.h.b16 %v1766
    %v1807 = vunpack.c.l.b16 %v1767
    %v1808 = vunpack.c.h.b16 %v1767
    %v1809 = vunpack.c.l.b16 %v1768
    %v1810 = vunpack.c.h.b16 %v1768
    %v1811 = vunpack.c.l.b16 %v1769
    %v1812 = vunpack.c.h.b16 %v1769
    %v1813 = vunpack.c.l.b16 %v1770
    %v1814 = vunpack.c.h.b16 %v1770
    %v1815 = vunpack.c.l.b16 %v1771
    %v1816 = vunpack.c.h.b16 %v1771
    %v1817 = vunpack.c.l.b16 %v1772
    %v1818 = vunpack.c.h.b16 %v1772
    %v1819 = vunpack.c.l.b16 %v1773
    %v1820 = vunpack.c.h.b16 %v1773
    %v1821 = vunpack.c.l.b16 %v1774
    %v1822 = vunpack.c.h.b16 %v1774
    %v1823 = vpack.c.b16 %v1793, %v1791
    %v1824 = vpack.c.b16 %v1794, %v1792
    %v1825 = vpack.c.b16 %v1797, %v1795
    %v1826 = vpack.c.b16 %v1798, %v1796
    %v1827 = vpack.c.b16 %v1801, %v1799
    %v1828 = vpack.c.b16 %v1802, %v1800
    %v1829 = vpack.c.b16 %v1805, %v1803
    %v1830 = vpack.c.b16 %v1806, %v1804
    %v1831 = vpack.c.b16 %v1809, %v1807
    %v1832 = vpack.c.b16 %v1810, %v1808
    %v1833 = vpack.c.b16 %v1813, %v1811
    %v1834 = vpack.c.b16 %v1814, %v1812
    %v1835 = vpack.c.b16 %v1817, %v1815
    %v1836 = vpack.c.b16 %v1818, %v1816
    %v1837 = vpack.c.b16 %v1821, %v1819
    %v1838 = vpack.c.b16 %v1822, %v1820
    %1855 = vmatprep.subr.bf16.mxu0 %v1824
    %1856 = vmatpush1.bf16.msra.mxu0 %v1823
    %1857 = vmatprep.subr.bf16.mxu0 %v1826
    %1858 = vmatpush1.bf16.msra.mxu0 %v1825
    %1859 = vmatprep.subr.bf16.mxu0 %v1828
    %1860 = vmatpush1.bf16.msra.mxu0 %v1827
    %1861 = vmatprep.subr.bf16.mxu0 %v1830
    %1862 = vmatpush1.bf16.msra.mxu0 %v1829
    %1863 = vmatprep.subr.bf16.mxu0 %v1832
    %1864 = vmatpush1.bf16.msra.mxu0 %v1831
    %1865 = vmatprep.subr.bf16.mxu0 %v1834
    %1866 = vmatpush1.bf16.msra.mxu0 %v1833
    %1867 = vmatprep.subr.bf16.mxu0 %v1836
    %1868 = vmatpush1.bf16.msra.mxu0 %v1835
    %1869 = vmatprep.subr.bf16.mxu0 %v1838
    %1870 = vmatpush1.bf16.msra.mxu0 %v1837
    %1871 = vmatprep.subr.bf16.mxu0 0
    %1872 = vmatpush1.bf16.msra.mxu0 0
    %1873 = vmatprep.subr.bf16.mxu0 0
    %1874 = vmatpush1.bf16.msra.mxu0 0
    %1875 = vmatprep.subr.bf16.mxu0 0
    %1876 = vmatpush1.bf16.msra.mxu0 0
    %1877 = vmatprep.subr.bf16.mxu0 0
    %1878 = vmatpush1.bf16.msra.mxu0 0
    %1879 = vmatprep.subr.bf16.mxu0 0
    %1880 = vmatpush1.bf16.msra.mxu0 0
    %1881 = vmatprep.subr.bf16.mxu0 0
    %1882 = vmatpush1.bf16.msra.mxu0 0
    %1883 = vmatprep.subr.bf16.mxu0 0
    %1884 = vmatpush1.bf16.msra.mxu0 0
    %1885 = vmatprep.subr.bf16.mxu0 0
    %1886 = vmatpush1.bf16.msra.mxu0 0
    %1887 = vmatprep.mubr.bf16.mxu0 0
    %1888 = vmatmul.mubr.bf16.gmra.mrb[0].mxu0 %v1596
    %v1889 = vpop.f32.mrb[0].mxu0
    %v1890 = vadd.f32 0.0, %v1889
    %v1891 = vpop.f32.mrb[0].mxu0
    %v1892 = vadd.f32 0.0, %v1891
    %v1893 = vpop.f32.mrb[0].mxu0
    %v1894 = vadd.f32 0.0, %v1893
    %v1895 = vpop.f32.mrb[0].mxu0
    %v1896 = vadd.f32 0.0, %v1895
    %1897 = vmatprep.mubr.bf16.mxu0 0
    %1898 = vmatmul.mubr.bf16.gmra.mrb[0].mxu0 %v1757
    %v1899 = vpop.f32.mrb[0].mxu0
    %v1900 = vadd.f32 0.0, %v1899
    %v1901 = vpop.f32.mrb[0].mxu0
    %v1902 = vadd.f32 0.0, %v1901
    %v1903 = vpop.f32.mrb[0].mxu0
    %v1904 = vadd.f32 0.0, %v1903
    %v1905 = vpop.f32.mrb[0].mxu0
    %v1906 = vadd.f32 0.0, %v1905
    %1907 = vdwg.mxu0
    %v1908 = vadd.f32 %v1747, %v1890
    %v1909 = vadd.f32 %v1748, %v1892
    %v1910 = vadd.f32 %v1749, %v1894
    %v1911 = vadd.f32 %v1750, %v1896
    %v1912 = vadd.f32 %v1751, %v1900
    %v1913 = vadd.f32 %v1752, %v1902
    %v1914 = vadd.f32 %v1753, %v1904
    %v1915 = vadd.f32 %v1754, %v1906
    %v1916 = vmax.f32 %v1908, %v1912
    %v1917 = vmax.f32 %v1909, %v1913
    %v1918 = vmax.f32 %v1910, %v1914
    %v1919 = vmax.f32 %v1911, %v1915
    %v1920 = vmax.f32 %v1916, %v1917
    %v1921 = vmax.f32 %v1918, %v1919
    %v1922 = vld [vmem:[%s3 + $0x1] sm:$0x1]
    %v1923 = vlaneseq
    %v1924 = vshrl.u32 %v1923, 7
    %v1925 = vsub.s32 0, %v1924
    %v1926 = vrot.slane %v1922, %v1925
    %v1927 = vadd.f32 %v1920, %v1926
    %v1928 = vadd.f32 %v1921, %v1926
    %v1929 = vmax.f32 %v1927, 0.0
    %v1930 = vmax.f32 %v1928, 0.0
    %v1932 = vrot.slane %v1930, 7
    %vm1934 = vcmask 1040384
    %v1935 = vsel %vm1934, %v1929, %v1932
    %v1936 = vpack.c.bf16 %v1935, %v1935
    %v1937 = vld [vmem:[#allocation3] sm:$0xf]
    %v1938 = vld [vmem:[#allocation3 + $0x4] sm:$0xf]
    %v1939 = vld [vmem:[#allocation3 + $0x8] sm:$0xf]
    %v1940 = vld [vmem:[#allocation3 + $0xc] sm:$0xf]
    %v1941 = vld [vmem:[#allocation3 + $0x10] sm:$0xf]
    %v1942 = vld [vmem:[#allocation3 + $0x14] sm:$0xf]
    %v1943 = vld [vmem:[#allocation3 + $0x18] sm:$0xf]
    %v1944 = vld [vmem:[#allocation3 + $0x1c] sm:$0xf]
    %v1945 = vld [vmem:[#allocation3 + $0x20] sm:$0xf]
    %v1946 = vld [vmem:[#allocation3 + $0x24] sm:$0xf]
    %v1947 = vld [vmem:[#allocation3 + $0x28] sm:$0xf]
    %v1948 = vld [vmem:[#allocation3 + $0x2c] sm:$0xf]
    %v1949 = vld [vmem:[#allocation3 + $0x30] sm:$0xf]
    %v1950 = vld [vmem:[#allocation3 + $0x34] sm:$0xf]
    %v1951 = vld [vmem:[#allocation3 + $0x38] sm:$0xf]
    %v1952 = vld [vmem:[#allocation3 + $0x3c] sm:$0xf]
    %v1954 = vrot.slane %v1929, 1
    %v1956 = vsel %vm1934, %v1954, %v1930
    %v1957 = vpack.c.bf16 %v1956, %v1956
    %s1958 = scalar_lea.vmem [#allocation3], 64
    %v1959 = vld [vmem:[%s1958] sm:$0xf]
    %v1960 = vld [vmem:[%s1958 + $0x4] sm:$0xf]
    %v1961 = vld [vmem:[%s1958 + $0x8] sm:$0xf]
    %v1962 = vld [vmem:[%s1958 + $0xc] sm:$0xf]
    %v1963 = vld [vmem:[%s1958 + $0x10] sm:$0xf]
    %v1964 = vld [vmem:[%s1958 + $0x14] sm:$0xf]
    %v1965 = vld [vmem:[%s1958 + $0x18] sm:$0xf]
    %v1966 = vld [vmem:[%s1958 + $0x1c] sm:$0xf]
    %v1967 = vld [vmem:[%s1958 + $0x20] sm:$0xf]
    %v1968 = vld [vmem:[%s1958 + $0x24] sm:$0xf]
    %v1969 = vld [vmem:[%s1958 + $0x28] sm:$0xf]
    %v1970 = vld [vmem:[%s1958 + $0x2c] sm:$0xf]
    %v1971 = vld [vmem:[%s1958 + $0x30] sm:$0xf]
    %v1972 = vld [vmem:[%s1958 + $0x34] sm:$0xf]
    %v1973 = vld [vmem:[%s1958 + $0x38] sm:$0xf]
    %v1974 = vld [vmem:[%s1958 + $0x3c] sm:$0xf]
    %v1991 = vunpack.c.l.b16 %v1959
    %v1992 = vunpack.c.l.b16 %v1960
    %v1993 = vunpack.c.l.b16 %v1961
    %v1994 = vunpack.c.l.b16 %v1962
    %v1995 = vunpack.c.l.b16 %v1963
    %v1996 = vunpack.c.l.b16 %v1964
    %v1997 = vunpack.c.l.b16 %v1965
    %v1998 = vunpack.c.l.b16 %v1966
    %v1999 = vunpack.c.l.b16 %v1967
    %v2000 = vunpack.c.l.b16 %v1968
    %v2001 = vunpack.c.l.b16 %v1969
    %v2002 = vunpack.c.l.b16 %v1970
    %v2003 = vunpack.c.l.b16 %v1971
    %v2004 = vunpack.c.l.b16 %v1972
    %v2005 = vunpack.c.l.b16 %v1973
    %v2006 = vunpack.c.l.b16 %v1974
    %v2007 = vpack.c.b16 %v1992, %v1991
    %v2008 = vpack.c.b16 %v1994, %v1993
    %v2009 = vpack.c.b16 %v1996, %v1995
    %v2010 = vpack.c.b16 %v1998, %v1997
    %v2011 = vpack.c.b16 %v2000, %v1999
    %v2012 = vpack.c.b16 %v2002, %v2001
    %v2013 = vpack.c.b16 %v2004, %v2003
    %v2014 = vpack.c.b16 %v2006, %v2005
    %2023 = vmatprep.subr.bf16.mxu0 0
    %2024 = vmatpush1.bf16.msra.mxu0 %v2007
    %2025 = vmatprep.subr.bf16.mxu0 0
    %2026 = vmatpush1.bf16.msra.mxu0 %v2008
    %2027 = vmatprep.subr.bf16.mxu0 0
    %2028 = vmatpush1.bf16.msra.mxu0 %v2009
    %2029 = vmatprep.subr.bf16.mxu0 0
    %2030 = vmatpush1.bf16.msra.mxu0 %v2010
    %2031 = vmatprep.subr.bf16.mxu0 0
    %2032 = vmatpush1.bf16.msra.mxu0 %v2011
    %2033 = vmatprep.subr.bf16.mxu0 0
    %2034 = vmatpush1.bf16.msra.mxu0 %v2012
    %2035 = vmatprep.subr.bf16.mxu0 0
    %2036 = vmatpush1.bf16.msra.mxu0 %v2013
    %2037 = vmatprep.subr.bf16.mxu0 0
    %2038 = vmatpush1.bf16.msra.mxu0 %v2014
    %2039 = vmatprep.subr.bf16.mxu0 0
    %2040 = vmatpush1.bf16.msra.mxu0 0
    %2041 = vmatprep.subr.bf16.mxu0 0
    %2042 = vmatpush1.bf16.msra.mxu0 0
    %2043 = vmatprep.subr.bf16.mxu0 0
    %2044 = vmatpush1.bf16.msra.mxu0 0
    %2045 = vmatprep.subr.bf16.mxu0 0
    %2046 = vmatpush1.bf16.msra.mxu0 0
    %2047 = vmatprep.subr.bf16.mxu0 0
    %2048 = vmatpush1.bf16.msra.mxu0 0
    %2049 = vmatprep.subr.bf16.mxu0 0
    %2050 = vmatpush1.bf16.msra.mxu0 0
    %2051 = vmatprep.subr.bf16.mxu0 0
    %2052 = vmatpush1.bf16.msra.mxu0 0
    %2053 = vmatprep.subr.bf16.mxu0 0
    %2054 = vmatpush1.bf16.msra.mxu0 0
    %2055 = vmatprep.mubr.bf16.mxu0 0
    %2056 = vmatmul.mubr.bf16.gmra.mrb[0].mxu0 %v1957
    %v2057 = vpop.f32.mrb[0].mxu0
    %v2058 = vadd.f32 0.0, %v2057
    %v2059 = vpop.f32.mrb[0].mxu0
    %v2060 = vpop.f32.mrb[0].mxu0
    %v2061 = vpop.f32.mrb[0].mxu0
    %2062 = vdwg.mxu0
    %v2079 = vunpack.c.l.b16 %v1937
    %v2080 = vunpack.c.l.b16 %v1938
    %v2081 = vunpack.c.l.b16 %v1939
    %v2082 = vunpack.c.l.b16 %v1940
    %v2083 = vunpack.c.l.b16 %v1941
    %v2084 = vunpack.c.l.b16 %v1942
    %v2085 = vunpack.c.l.b16 %v1943
    %v2086 = vunpack.c.l.b16 %v1944
    %v2087 = vunpack.c.l.b16 %v1945
    %v2088 = vunpack.c.l.b16 %v1946
    %v2089 = vunpack.c.l.b16 %v1947
    %v2090 = vunpack.c.l.b16 %v1948
    %v2091 = vunpack.c.l.b16 %v1949
    %v2092 = vunpack.c.l.b16 %v1950
    %v2093 = vunpack.c.l.b16 %v1951
    %v2094 = vunpack.c.l.b16 %v1952
    %v2095 = vpack.c.b16 %v2080, %v2079
    %v2096 = vpack.c.b16 %v2082, %v2081
    %v2097 = vpack.c.b16 %v2084, %v2083
    %v2098 = vpack.c.b16 %v2086, %v2085
    %v2099 = vpack.c.b16 %v2088, %v2087
    %v2100 = vpack.c.b16 %v2090, %v2089
    %v2101 = vpack.c.b16 %v2092, %v2091
    %v2102 = vpack.c.b16 %v2094, %v2093
    %2111 = vmatprep.subr.bf16.mxu0 0
    %2112 = vmatpush1.bf16.msra.mxu0 %v2095
    %2113 = vmatprep.subr.bf16.mxu0 0
    %2114 = vmatpush1.bf16.msra.mxu0 %v2096
    %2115 = vmatprep.subr.bf16.mxu0 0
    %2116 = vmatpush1.bf16.msra.mxu0 %v2097
    %2117 = vmatprep.subr.bf16.mxu0 0
    %2118 = vmatpush1.bf16.msra.mxu0 %v2098
    %2119 = vmatprep.subr.bf16.mxu0 0
    %2120 = vmatpush1.bf16.msra.mxu0 %v2099
    %2121 = vmatprep.subr.bf16.mxu0 0
    %2122 = vmatpush1.bf16.msra.mxu0 %v2100
    %2123 = vmatprep.subr.bf16.mxu0 0
    %2124 = vmatpush1.bf16.msra.mxu0 %v2101
    %2125 = vmatprep.subr.bf16.mxu0 0
    %2126 = vmatpush1.bf16.msra.mxu0 %v2102
    %2127 = vmatprep.subr.bf16.mxu0 0
    %2128 = vmatpush1.bf16.msra.mxu0 0
    %2129 = vmatprep.subr.bf16.mxu0 0
    %2130 = vmatpush1.bf16.msra.mxu0 0
    %2131 = vmatprep.subr.bf16.mxu0 0
    %2132 = vmatpush1.bf16.msra.mxu0 0
    %2133 = vmatprep.subr.bf16.mxu0 0
    %2134 = vmatpush1.bf16.msra.mxu0 0
    %2135 = vmatprep.subr.bf16.mxu0 0
    %2136 = vmatpush1.bf16.msra.mxu0 0
    %2137 = vmatprep.subr.bf16.mxu0 0
    %2138 = vmatpush1.bf16.msra.mxu0 0
    %2139 = vmatprep.subr.bf16.mxu0 0
    %2140 = vmatpush1.bf16.msra.mxu0 0
    %2141 = vmatprep.subr.bf16.mxu0 0
    %2142 = vmatpush1.bf16.msra.mxu0 0
    %2143 = vmatprep.mubr.bf16.mxu0 0
    %2144 = vmatmul.mubr.bf16.gmra.mrb[0].mxu0 %v1936
    %v2145 = vpop.f32.mrb[0].mxu0
    %v2146 = vadd.f32 %v2058, %v2145
    %v2147 = vpop.f32.mrb[0].mxu0
    %v2148 = vpop.f32.mrb[0].mxu0
    %v2149 = vpop.f32.mrb[0].mxu0
    %2150 = vdwg.mxu0
    %v2151 = vrot.slane %v1929, 2
    %v2153 = vrot.slane %v1930, 1
    %v2155 = vsel %vm1934, %v2151, %v2153
    %v2156 = vpack.c.bf16 %v2155, %v2155
    %s2157 = scalar_lea.vmem [#allocation3], 128
    %v2158 = vld [vmem:[%s2157] sm:$0xf]
    %v2159 = vld [vmem:[%s2157 + $0x4] sm:$0xf]
    %v2160 = vld [vmem:[%s2157 + $0x8] sm:$0xf]
    %v2161 = vld [vmem:[%s2157 + $0xc] sm:$0xf]
    %v2162 = vld [vmem:[%s2157 + $0x10] sm:$0xf]
    %v2163 = vld [vmem:[%s2157 + $0x14] sm:$0xf]
    %v2164 = vld [vmem:[%s2157 + $0x18] sm:$0xf]
    %v2165 = vld [vmem:[%s2157 + $0x1c] sm:$0xf]
    %v2166 = vld [vmem:[%s2157 + $0x20] sm:$0xf]
    %v2167 = vld [vmem:[%s2157 + $0x24] sm:$0xf]
    %v2168 = vld [vmem:[%s2157 + $0x28] sm:$0xf]
    %v2169 = vld [vmem:[%s2157 + $0x2c] sm:$0xf]
    %v2170 = vld [vmem:[%s2157 + $0x30] sm:$0xf]
    %v2171 = vld [vmem:[%s2157 + $0x34] sm:$0xf]
    %v2172 = vld [vmem:[%s2157 + $0x38] sm:$0xf]
    %v2173 = vld [vmem:[%s2157 + $0x3c] sm:$0xf]
    %v2190 = vunpack.c.l.b16 %v2158
    %v2191 = vunpack.c.l.b16 %v2159
    %v2192 = vunpack.c.l.b16 %v2160
    %v2193 = vunpack.c.l.b16 %v2161
    %v2194 = vunpack.c.l.b16 %v2162
    %v2195 = vunpack.c.l.b16 %v2163
    %v2196 = vunpack.c.l.b16 %v2164
    %v2197 = vunpack.c.l.b16 %v2165
    %v2198 = vunpack.c.l.b16 %v2166
    %v2199 = vunpack.c.l.b16 %v2167
    %v2200 = vunpack.c.l.b16 %v2168
    %v2201 = vunpack.c.l.b16 %v2169
    %v2202 = vunpack.c.l.b16 %v2170
    %v2203 = vunpack.c.l.b16 %v2171
    %v2204 = vunpack.c.l.b16 %v2172
    %v2205 = vunpack.c.l.b16 %v2173
    %v2206 = vpack.c.b16 %v2191, %v2190
    %v2207 = vpack.c.b16 %v2193, %v2192
    %v2208 = vpack.c.b16 %v2195, %v2194
    %v2209 = vpack.c.b16 %v2197, %v2196
    %v2210 = vpack.c.b16 %v2199, %v2198
    %v2211 = vpack.c.b16 %v2201, %v2200
    %v2212 = vpack.c.b16 %v2203, %v2202
    %v2213 = vpack.c.b16 %v2205, %v2204
    %2222 = vmatprep.subr.bf16.mxu0 0
    %2223 = vmatpush1.bf16.msra.mxu0 %v2206
    %2224 = vmatprep.subr.bf16.mxu0 0
    %2225 = vmatpush1.bf16.msra.mxu0 %v2207
    %2226 = vmatprep.subr.bf16.mxu0 0
    %2227 = vmatpush1.bf16.msra.mxu0 %v2208
    %2228 = vmatprep.subr.bf16.mxu0 0
    %2229 = vmatpush1.bf16.msra.mxu0 %v2209
    %2230 = vmatprep.subr.bf16.mxu0 0
    %2231 = vmatpush1.bf16.msra.mxu0 %v2210
    %2232 = vmatprep.subr.bf16.mxu0 0
    %2233 = vmatpush1.bf16.msra.mxu0 %v2211
    %2234 = vmatprep.subr.bf16.mxu0 0
    %2235 = vmatpush1.bf16.msra.mxu0 %v2212
    %2236 = vmatprep.subr.bf16.mxu0 0
    %2237 = vmatpush1.bf16.msra.mxu0 %v2213
    %2238 = vmatprep.subr.bf16.mxu0 0
    %2239 = vmatpush1.bf16.msra.mxu0 0
    %2240 = vmatprep.subr.bf16.mxu0 0
    %2241 = vmatpush1.bf16.msra.mxu0 0
    %2242 = vmatprep.subr.bf16.mxu0 0
    %2243 = vmatpush1.bf16.msra.mxu0 0
    %2244 = vmatprep.subr.bf16.mxu0 0
    %2245 = vmatpush1.bf16.msra.mxu0 0
    %2246 = vmatprep.subr.bf16.mxu0 0
    %2247 = vmatpush1.bf16.msra.mxu0 0
    %2248 = vmatprep.subr.bf16.mxu0 0
    %2249 = vmatpush1.bf16.msra.mxu0 0
    %2250 = vmatprep.subr.bf16.mxu0 0
    %2251 = vmatpush1.bf16.msra.mxu0 0
    %2252 = vmatprep.subr.bf16.mxu0 0
    %2253 = vmatpush1.bf16.msra.mxu0 0
    %2254 = vmatprep.mubr.bf16.mxu0 0
    %2255 = vmatmul.mubr.bf16.gmra.mrb[0].mxu0 %v2156
    %v2256 = vpop.f32.mrb[0].mxu0
    %v2257 = vadd.f32 0.0, %v2256
    %v2258 = vpop.f32.mrb[0].mxu0
    %v2259 = vpop.f32.mrb[0].mxu0
    %v2260 = vpop.f32.mrb[0].mxu0
    %2261 = vdwg.mxu0
    %v2262 = vadd.f32 %v2146, %v2257
    %v2263 = vrot.slane %v1929, 3
    %v2265 = vrot.slane %v1930, 2
    %v2267 = vsel %vm1934, %v2263, %v2265
    %v2268 = vpack.c.bf16 %v2267, %v2267
    %s2269 = scalar_lea.vmem [#allocation3], 192
    %v2270 = vld [vmem:[%s2269] sm:$0xf]
    %v2271 = vld [vmem:[%s2269 + $0x4] sm:$0xf]
    %v2272 = vld [vmem:[%s2269 + $0x8] sm:$0xf]
    %v2273 = vld [vmem:[%s2269 + $0xc] sm:$0xf]
    %v2274 = vld [vmem:[%s2269 + $0x10] sm:$0xf]
    %v2275 = vld [vmem:[%s2269 + $0x14] sm:$0xf]
    %v2276 = vld [vmem:[%s2269 + $0x18] sm:$0xf]
    %v2277 = vld [vmem:[%s2269 + $0x1c] sm:$0xf]
    %v2278 = vld [vmem:[%s2269 + $0x20] sm:$0xf]
    %v2279 = vld [vmem:[%s2269 + $0x24] sm:$0xf]
    %v2280 = vld [vmem:[%s2269 + $0x28] sm:$0xf]
    %v2281 = vld [vmem:[%s2269 + $0x2c] sm:$0xf]
    %v2282 = vld [vmem:[%s2269 + $0x30] sm:$0xf]
    %v2283 = vld [vmem:[%s2269 + $0x34] sm:$0xf]
    %v2284 = vld [vmem:[%s2269 + $0x38] sm:$0xf]
    %v2285 = vld [vmem:[%s2269 + $0x3c] sm:$0xf]
    %v2302 = vunpack.c.l.b16 %v2270
    %v2303 = vunpack.c.l.b16 %v2271
    %v2304 = vunpack.c.l.b16 %v2272
    %v2305 = vunpack.c.l.b16 %v2273
    %v2306 = vunpack.c.l.b16 %v2274
    %v2307 = vunpack.c.l.b16 %v2275
    %v2308 = vunpack.c.l.b16 %v2276
    %v2309 = vunpack.c.l.b16 %v2277
    %v2310 = vunpack.c.l.b16 %v2278
    %v2311 = vunpack.c.l.b16 %v2279
    %v2312 = vunpack.c.l.b16 %v2280
    %v2313 = vunpack.c.l.b16 %v2281
    %v2314 = vunpack.c.l.b16 %v2282
    %v2315 = vunpack.c.l.b16 %v2283
    %v2316 = vunpack.c.l.b16 %v2284
    %v2317 = vunpack.c.l.b16 %v2285
    %v2318 = vpack.c.b16 %v2303, %v2302
    %v2319 = vpack.c.b16 %v2305, %v2304
    %v2320 = vpack.c.b16 %v2307, %v2306
    %v2321 = vpack.c.b16 %v2309, %v2308
    %v2322 = vpack.c.b16 %v2311, %v2310
    %v2323 = vpack.c.b16 %v2313, %v2312
    %v2324 = vpack.c.b16 %v2315, %v2314
    %v2325 = vpack.c.b16 %v2317, %v2316
    %2334 = vmatprep.subr.bf16.mxu0 0
    %2335 = vmatpush1.bf16.msra.mxu0 %v2318
    %2336 = vmatprep.subr.bf16.mxu0 0
    %2337 = vmatpush1.bf16.msra.mxu0 %v2319
    %2338 = vmatprep.subr.bf16.mxu0 0
    %2339 = vmatpush1.bf16.msra.mxu0 %v2320
    %2340 = vmatprep.subr.bf16.mxu0 0
    %2341 = vmatpush1.bf16.msra.mxu0 %v2321
    %2342 = vmatprep.subr.bf16.mxu0 0
    %2343 = vmatpush1.bf16.msra.mxu0 %v2322
    %2344 = vmatprep.subr.bf16.mxu0 0
    %2345 = vmatpush1.bf16.msra.mxu0 %v2323
    %2346 = vmatprep.subr.bf16.mxu0 0
    %2347 = vmatpush1.bf16.msra.mxu0 %v2324
    %2348 = vmatprep.subr.bf16.mxu0 0
    %2349 = vmatpush1.bf16.msra.mxu0 %v2325
    %2350 = vmatprep.subr.bf16.mxu0 0
    %2351 = vmatpush1.bf16.msra.mxu0 0
    %2352 = vmatprep.subr.bf16.mxu0 0
    %2353 = vmatpush1.bf16.msra.mxu0 0
    %2354 = vmatprep.subr.bf16.mxu0 0
    %2355 = vmatpush1.bf16.msra.mxu0 0
    %2356 = vmatprep.subr.bf16.mxu0 0
    %2357 = vmatpush1.bf16.msra.mxu0 0
    %2358 = vmatprep.subr.bf16.mxu0 0
    %2359 = vmatpush1.bf16.msra.mxu0 0
    %2360 = vmatprep.subr.bf16.mxu0 0
    %2361 = vmatpush1.bf16.msra.mxu0 0
    %2362 = vmatprep.subr.bf16.mxu0 0
    %2363 = vmatpush1.bf16.msra.mxu0 0
    %2364 = vmatprep.subr.bf16.mxu0 0
    %2365 = vmatpush1.bf16.msra.mxu0 0
    %2366 = vmatprep.mubr.bf16.mxu0 0
    %2367 = vmatmul.mubr.bf16.gmra.mrb[0].mxu0 %v2268
    %v2368 = vpop.f32.mrb[0].mxu0
    %v2369 = vadd.f32 0.0, %v2368
    %v2370 = vpop.f32.mrb[0].mxu0
    %v2371 = vpop.f32.mrb[0].mxu0
    %v2372 = vpop.f32.mrb[0].mxu0
    %2373 = vdwg.mxu0
    %v2374 = vadd.f32 %v2262, %v2369
    %v2375 = vrot.slane %v1929, 4
    %v2377 = vrot.slane %v1930, 3
    %v2379 = vsel %vm1934, %v2375, %v2377
    %v2380 = vpack.c.bf16 %v2379, %v2379
    %s2381 = scalar_lea.vmem [#allocation3], 256
    %v2382 = vld [vmem:[%s2381] sm:$0xf]
    %v2383 = vld [vmem:[%s2381 + $0x4] sm:$0xf]
    %v2384 = vld [vmem:[%s2381 + $0x8] sm:$0xf]
    %v2385 = vld [vmem:[%s2381 + $0xc] sm:$0xf]
    %v2386 = vld [vmem:[%s2381 + $0x10] sm:$0xf]
    %v2387 = vld [vmem:[%s2381 + $0x14] sm:$0xf]
    %v2388 = vld [vmem:[%s2381 + $0x18] sm:$0xf]
    %v2389 = vld [vmem:[%s2381 + $0x1c] sm:$0xf]
    %v2390 = vld [vmem:[%s2381 + $0x20] sm:$0xf]
    %v2391 = vld [vmem:[%s2381 + $0x24] sm:$0xf]
    %v2392 = vld [vmem:[%s2381 + $0x28] sm:$0xf]
    %v2393 = vld [vmem:[%s2381 + $0x2c] sm:$0xf]
    %v2394 = vld [vmem:[%s2381 + $0x30] sm:$0xf]
    %v2395 = vld [vmem:[%s2381 + $0x34] sm:$0xf]
    %v2396 = vld [vmem:[%s2381 + $0x38] sm:$0xf]
    %v2397 = vld [vmem:[%s2381 + $0x3c] sm:$0xf]
    %v2414 = vunpack.c.l.b16 %v2382
    %v2415 = vunpack.c.l.b16 %v2383
    %v2416 = vunpack.c.l.b16 %v2384
    %v2417 = vunpack.c.l.b16 %v2385
    %v2418 = vunpack.c.l.b16 %v2386
    %v2419 = vunpack.c.l.b16 %v2387
    %v2420 = vunpack.c.l.b16 %v2388
    %v2421 = vunpack.c.l.b16 %v2389
    %v2422 = vunpack.c.l.b16 %v2390
    %v2423 = vunpack.c.l.b16 %v2391
    %v2424 = vunpack.c.l.b16 %v2392
    %v2425 = vunpack.c.l.b16 %v2393
    %v2426 = vunpack.c.l.b16 %v2394
    %v2427 = vunpack.c.l.b16 %v2395
    %v2428 = vunpack.c.l.b16 %v2396
    %v2429 = vunpack.c.l.b16 %v2397
    %v2430 = vpack.c.b16 %v2415, %v2414
    %v2431 = vpack.c.b16 %v2417, %v2416
    %v2432 = vpack.c.b16 %v2419, %v2418
    %v2433 = vpack.c.b16 %v2421, %v2420
    %v2434 = vpack.c.b16 %v2423, %v2422
    %v2435 = vpack.c.b16 %v2425, %v2424
    %v2436 = vpack.c.b16 %v2427, %v2426
    %v2437 = vpack.c.b16 %v2429, %v2428
    %2446 = vmatprep.subr.bf16.mxu0 0
    %2447 = vmatpush1.bf16.msra.mxu0 %v2430
    %2448 = vmatprep.subr.bf16.mxu0 0
    %2449 = vmatpush1.bf16.msra.mxu0 %v2431
    %2450 = vmatprep.subr.bf16.mxu0 0
    %2451 = vmatpush1.bf16.msra.mxu0 %v2432
    %2452 = vmatprep.subr.bf16.mxu0 0
    %2453 = vmatpush1.bf16.msra.mxu0 %v2433
    %2454 = vmatprep.subr.bf16.mxu0 0
    %2455 = vmatpush1.bf16.msra.mxu0 %v2434
    %2456 = vmatprep.subr.bf16.mxu0 0
    %2457 = vmatpush1.bf16.msra.mxu0 %v2435
    %2458 = vmatprep.subr.bf16.mxu0 0
    %2459 = vmatpush1.bf16.msra.mxu0 %v2436
    %2460 = vmatprep.subr.bf16.mxu0 0
    %2461 = vmatpush1.bf16.msra.mxu0 %v2437
    %2462 = vmatprep.subr.bf16.mxu0 0
    %2463 = vmatpush1.bf16.msra.mxu0 0
    %2464 = vmatprep.subr.bf16.mxu0 0
    %2465 = vmatpush1.bf16.msra.mxu0 0
    %2466 = vmatprep.subr.bf16.mxu0 0
    %2467 = vmatpush1.bf16.msra.mxu0 0
    %2468 = vmatprep.subr.bf16.mxu0 0
    %2469 = vmatpush1.bf16.msra.mxu0 0
    %2470 = vmatprep.subr.bf16.mxu0 0
    %2471 = vmatpush1.bf16.msra.mxu0 0
    %2472 = vmatprep.subr.bf16.mxu0 0
    %2473 = vmatpush1.bf16.msra.mxu0 0
    %2474 = vmatprep.subr.bf16.mxu0 0
    %2475 = vmatpush1.bf16.msra.mxu0 0
    %2476 = vmatprep.subr.bf16.mxu0 0
    %2477 = vmatpush1.bf16.msra.mxu0 0
    %2478 = vmatprep.mubr.bf16.mxu0 0
    %2479 = vmatmul.mubr.bf16.gmra.mrb[0].mxu0 %v2380
    %v2480 = vpop.f32.mrb[0].mxu0
    %v2481 = vadd.f32 0.0, %v2480
    %v2482 = vpop.f32.mrb[0].mxu0
    %v2483 = vpop.f32.mrb[0].mxu0
    %v2484 = vpop.f32.mrb[0].mxu0
    %2485 = vdwg.mxu0
    %v2486 = vadd.f32 %v2374, %v2481
    %v2487 = vld [vmem:[%s3 + $0x2] sm:$0x1]
    %v2488 = vlaneseq
    %v2489 = vshrl.u32 %v2488, 7
    %v2490 = vsub.s32 0, %v2489
    %v2491 = vrot.slane %v2487, %v2490
    %v2492 = vadd.f32 %v2486, %v2491
    %v2493 = vmax.f32 %v2492, 0.0
    %v2494 = vpack.c.bf16 %v2493, %v2493
    %s2495 = scalar_lea.vmem [#allocation3], 320
    %v2496 = vld [vmem:[%s2495] sm:$0xf]
    %v2497 = vld [vmem:[%s2495 + $0x4] sm:$0xf]
    %v2498 = vld [vmem:[%s2495 + $0x8] sm:$0xf]
    %v2499 = vld [vmem:[%s2495 + $0xc] sm:$0xf]
    %v2500 = vld [vmem:[%s2495 + $0x10] sm:$0xf]
    %v2501 = vld [vmem:[%s2495 + $0x14] sm:$0xf]
    %v2502 = vld [vmem:[%s2495 + $0x18] sm:$0xf]
    %v2503 = vld [vmem:[%s2495 + $0x1c] sm:$0xf]
    %v2504 = vld [vmem:[%s2495 + $0x20] sm:$0xf]
    %v2505 = vld [vmem:[%s2495 + $0x24] sm:$0xf]
    %v2506 = vld [vmem:[%s2495 + $0x28] sm:$0xf]
    %v2507 = vld [vmem:[%s2495 + $0x2c] sm:$0xf]
    %v2508 = vld [vmem:[%s2495 + $0x30] sm:$0xf]
    %v2509 = vld [vmem:[%s2495 + $0x34] sm:$0xf]
    %v2510 = vld [vmem:[%s2495 + $0x38] sm:$0xf]
    %v2511 = vld [vmem:[%s2495 + $0x3c] sm:$0xf]
    %v2512 = vld [vmem:[%s3 + $0x3] sm:$0x1]
    %v2513 = vlaneseq
    %v2514 = vshrl.u32 %v2513, 7
    %v2515 = vsub.s32 0, %v2514
    %v2516 = vrot.slane %v2512, %v2515
    %v2533 = vunpack.c.l.b16 %v2496
    %v2534 = vunpack.c.l.b16 %v2497
    %v2535 = vunpack.c.l.b16 %v2498
    %v2536 = vunpack.c.l.b16 %v2499
    %v2537 = vunpack.c.l.b16 %v2500
    %v2538 = vunpack.c.l.b16 %v2501
    %v2539 = vunpack.c.l.b16 %v2502
    %v2540 = vunpack.c.l.b16 %v2503
    %v2541 = vunpack.c.l.b16 %v2504
    %v2542 = vunpack.c.l.b16 %v2505
    %v2543 = vunpack.c.l.b16 %v2506
    %v2544 = vunpack.c.l.b16 %v2507
    %v2545 = vunpack.c.l.b16 %v2508
    %v2546 = vunpack.c.l.b16 %v2509
    %v2547 = vunpack.c.l.b16 %v2510
    %v2548 = vunpack.c.l.b16 %v2511
    %v2549 = vpack.c.b16 %v2534, %v2533
    %v2550 = vpack.c.b16 %v2536, %v2535
    %v2551 = vpack.c.b16 %v2538, %v2537
    %v2552 = vpack.c.b16 %v2540, %v2539
    %v2553 = vpack.c.b16 %v2542, %v2541
    %v2554 = vpack.c.b16 %v2544, %v2543
    %v2555 = vpack.c.b16 %v2546, %v2545
    %v2556 = vpack.c.b16 %v2548, %v2547
    %2565 = vmatprep.subr.bf16.mxu0 0
    %2566 = vmatpush1.bf16.msra.mxu0 %v2549
    %2567 = vmatprep.subr.bf16.mxu0 0
    %2568 = vmatpush1.bf16.msra.mxu0 %v2550
    %2569 = vmatprep.subr.bf16.mxu0 0
    %2570 = vmatpush1.bf16.msra.mxu0 %v2551
    %2571 = vmatprep.subr.bf16.mxu0 0
    %2572 = vmatpush1.bf16.msra.mxu0 %v2552
    %2573 = vmatprep.subr.bf16.mxu0 0
    %2574 = vmatpush1.bf16.msra.mxu0 %v2553
    %2575 = vmatprep.subr.bf16.mxu0 0
    %2576 = vmatpush1.bf16.msra.mxu0 %v2554
    %2577 = vmatprep.subr.bf16.mxu0 0
    %2578 = vmatpush1.bf16.msra.mxu0 %v2555
    %2579 = vmatprep.subr.bf16.mxu0 0
    %2580 = vmatpush1.bf16.msra.mxu0 %v2556
    %2581 = vmatprep.subr.bf16.mxu0 0
    %2582 = vmatpush1.bf16.msra.mxu0 0
    %2583 = vmatprep.subr.bf16.mxu0 0
    %2584 = vmatpush1.bf16.msra.mxu0 0
    %2585 = vmatprep.subr.bf16.mxu0 0
    %2586 = vmatpush1.bf16.msra.mxu0 0
    %2587 = vmatprep.subr.bf16.mxu0 0
    %2588 = vmatpush1.bf16.msra.mxu0 0
    %2589 = vmatprep.subr.bf16.mxu0 0
    %2590 = vmatpush1.bf16.msra.mxu0 0
    %2591 = vmatprep.subr.bf16.mxu0 0
    %2592 = vmatpush1.bf16.msra.mxu0 0
    %2593 = vmatprep.subr.bf16.mxu0 0
    %2594 = vmatpush1.bf16.msra.mxu0 0
    %2595 = vmatprep.subr.bf16.mxu0 0
    %2596 = vmatpush1.bf16.msra.mxu0 0
    %2597 = vmatprep.mubr.bf16.mxu0 0
    %2598 = vmatmul.mubr.bf16.gmra.mrb[0].mxu0 %v2494
    %v2599 = vpop.f32.mrb[0].mxu0
    %v2600 = vadd.f32 %v2516, %v2599
    %v2601 = vpop.f32.mrb[0].mxu0
    %v2602 = vpop.f32.mrb[0].mxu0
    %v2603 = vpop.f32.mrb[0].mxu0
    %2604 = vdwg.mxu0
    %v2605 = vmax.f32 %v2600, 0.0
    %v2606 = vpack.c.bf16 %v2605, %v2605
    %s2607 = scalar_lea.vmem [#allocation3], 384
    %v2608 = vld [vmem:[%s2607] sm:$0xf]
    %v2609 = vld [vmem:[%s2607 + $0x4] sm:$0xf]
    %v2610 = vld [vmem:[%s2607 + $0x8] sm:$0xf]
    %v2611 = vld [vmem:[%s2607 + $0xc] sm:$0xf]
    %v2612 = vld [vmem:[%s2607 + $0x10] sm:$0xf]
    %v2613 = vld [vmem:[%s2607 + $0x14] sm:$0xf]
    %v2614 = vld [vmem:[%s2607 + $0x18] sm:$0xf]
    %v2615 = vld [vmem:[%s2607 + $0x1c] sm:$0xf]
    %v2616 = vld [vmem:[%s2607 + $0x20] sm:$0xf]
    %v2617 = vld [vmem:[%s2607 + $0x24] sm:$0xf]
    %v2618 = vld [vmem:[%s2607 + $0x28] sm:$0xf]
    %v2619 = vld [vmem:[%s2607 + $0x2c] sm:$0xf]
    %v2620 = vld [vmem:[%s2607 + $0x30] sm:$0xf]
    %v2621 = vld [vmem:[%s2607 + $0x34] sm:$0xf]
    %v2622 = vld [vmem:[%s2607 + $0x38] sm:$0xf]
    %v2623 = vld [vmem:[%s2607 + $0x3c] sm:$0xf]
    %v2624 = vld [vmem:[%s3 + $0x4] sm:$0x1]
    %v2625 = vlaneseq
    %v2626 = vshrl.u32 %v2625, 7
    %v2627 = vsub.s32 0, %v2626
    %v2628 = vrot.slane %v2624, %v2627
    %v2645 = vunpack.c.l.b16 %v2608
    %v2646 = vunpack.c.l.b16 %v2609
    %v2647 = vunpack.c.l.b16 %v2610
    %v2648 = vunpack.c.l.b16 %v2611
    %v2649 = vunpack.c.l.b16 %v2612
    %v2650 = vunpack.c.l.b16 %v2613
    %v2651 = vunpack.c.l.b16 %v2614
    %v2652 = vunpack.c.l.b16 %v2615
    %v2653 = vunpack.c.l.b16 %v2616
    %v2654 = vunpack.c.l.b16 %v2617
    %v2655 = vunpack.c.l.b16 %v2618
    %v2656 = vunpack.c.l.b16 %v2619
    %v2657 = vunpack.c.l.b16 %v2620
    %v2658 = vunpack.c.l.b16 %v2621
    %v2659 = vunpack.c.l.b16 %v2622
    %v2660 = vunpack.c.l.b16 %v2623
    %v2661 = vpack.c.b16 %v2646, %v2645
    %v2662 = vpack.c.b16 %v2648, %v2647
    %v2663 = vpack.c.b16 %v2650, %v2649
    %v2664 = vpack.c.b16 %v2652, %v2651
    %v2665 = vpack.c.b16 %v2654, %v2653
    %v2666 = vpack.c.b16 %v2656, %v2655
    %v2667 = vpack.c.b16 %v2658, %v2657
    %v2668 = vpack.c.b16 %v2660, %v2659
    %2677 = vmatprep.subr.bf16.mxu0 0
    %2678 = vmatpush1.bf16.msra.mxu0 %v2661
    %2679 = vmatprep.subr.bf16.mxu0 0
    %2680 = vmatpush1.bf16.msra.mxu0 %v2662
    %2681 = vmatprep.subr.bf16.mxu0 0
    %2682 = vmatpush1.bf16.msra.mxu0 %v2663
    %2683 = vmatprep.subr.bf16.mxu0 0
    %2684 = vmatpush1.bf16.msra.mxu0 %v2664
    %2685 = vmatprep.subr.bf16.mxu0 0
    %2686 = vmatpush1.bf16.msra.mxu0 %v2665
    %2687 = vmatprep.subr.bf16.mxu0 0
    %2688 = vmatpush1.bf16.msra.mxu0 %v2666
    %2689 = vmatprep.subr.bf16.mxu0 0
    %2690 = vmatpush1.bf16.msra.mxu0 %v2667
    %2691 = vmatprep.subr.bf16.mxu0 0
    %2692 = vmatpush1.bf16.msra.mxu0 %v2668
    %2693 = vmatprep.subr.bf16.mxu0 0
    %2694 = vmatpush1.bf16.msra.mxu0 0
    %2695 = vmatprep.subr.bf16.mxu0 0
    %2696 = vmatpush1.bf16.msra.mxu0 0
    %2697 = vmatprep.subr.bf16.mxu0 0
    %2698 = vmatpush1.bf16.msra.mxu0 0
    %2699 = vmatprep.subr.bf16.mxu0 0
    %2700 = vmatpush1.bf16.msra.mxu0 0
    %2701 = vmatprep.subr.bf16.mxu0 0
    %2702 = vmatpush1.bf16.msra.mxu0 0
    %2703 = vmatprep.subr.bf16.mxu0 0
    %2704 = vmatpush1.bf16.msra.mxu0 0
    %2705 = vmatprep.subr.bf16.mxu0 0
    %2706 = vmatpush1.bf16.msra.mxu0 0
    %2707 = vmatprep.subr.bf16.mxu0 0
    %2708 = vmatpush1.bf16.msra.mxu0 0
    %2709 = vmatprep.mubr.bf16.mxu0 0
    %2710 = vmatmul.mubr.bf16.gmra.mrb[0].mxu0 %v2606
    %v2711 = vpop.f32.mrb[0].mxu0
    %v2712 = vadd.f32 %v2628, %v2711
    %v2713 = vpop.f32.mrb[0].mxu0
    %v2714 = vpop.f32.mrb[0].mxu0
    %v2715 = vpop.f32.mrb[0].mxu0
    %2716 = vdwg.mxu0
    %2717 = vst [vmem:[#allocation6] sm:$0x3] %v2712
    // Predicated region
    $region22: #{custom_connet_forward.1} parent=1 // pred_check
      _
    $region23: #{custom_connet_forward.1} parent=1 // pred_check_branch
      %2719 = sbr.rel (0) target = $region25
    $region24: #{custom_connet_forward.1} parent=1 // pred_region
      %s2721 = ssub.s32 32, 32
      %2722 = vsyncadd [#allocation5], %s2721
      %s2724 = sshll.u32 [#allocation6], 4
      %s2725 = int_to_ptr.vmem [resolvable:$true] %s2724
      %2727 = dma.vmem_to_hbm [thread:$0]  %s2725, 32, %s4, [#allocation5]
    $region25: #{custom_connet_forward.1} parent=1 // pred_fallthru
      _
    // Predicated region
    $region26: #{custom_connet_forward.1} parent=1 // pred_check
      _
    $region27: #{custom_connet_forward.1} parent=1 // pred_check_branch
      %2729 = sbr.rel (0) target = $region29
    $region28: #{custom_connet_forward.1} parent=1 // pred_region
      %2730 = dma.done [#allocation5], 32
    $region29: #{custom_connet_forward.1} parent=1 // pred_fallthru
      _
    %2731 = vsyncpa [#allocation4], 1
    %2732 = vsyncpa [#allocation5], 1

</llo_original>
